<compile_context>
chip_gen: v5e
topology: v5e:2x2
jax: 0.10.0
libtpu: 0.0.40
codegen_flags: <defaults>
</compile_context>

<pallas_src>
import jax
import jax.numpy as jnp
from jax.experimental import pallas as pl
from jax.experimental.pallas import tpu as pltpu

_LANE = 128
_SUBLANE = 8
_NEG_INF = -1e30          # padded action lanes: never win the max, exp() -> 0
_VALID_OUTPUTS = ("logits", "log_probs", "probs")

_BUFFERED1_SUPPORTED = None   # lazily probed (pl.Buffered(1) on resident weights)


def _round_up(n, m):
    return ((n + m - 1) // m) * m


def _make_kernel(outputs, out_dtype, transposed, a_pad8):
    """Fused encoder + fc (+ Categorical normalization) kernel."""
    need_dist = ("log_probs" in outputs) or ("probs" in outputs)

    def kernel(x_ref, w1_ref, b1_ref, w2_ref, b2_ref, wf_ref, bf_ref, out_ref):
        cdt = w1_ref.dtype   # MXU input dtype (bf16 by default); accum is f32.

        # Encoder (VectorEncoder): Linear -> ReLU -> Linear -> ReLU (f32 math).
        h = jnp.dot(x_ref[...], w1_ref[...], preferred_element_type=jnp.float32)
        h = jnp.maximum(h + b1_ref[...], 0.0)
        h = jnp.dot(h.astype(cdt), w2_ref[...],
                    preferred_element_type=jnp.float32)
        h = jnp.maximum(h + b2_ref[...], 0.0)

        # Policy head (_fc).  Padded wf columns are zero and padded bias lanes
        # are -1e30, so padded logits never influence the softmax statistics.
        logits = jnp.dot(h.astype(cdt), wf_ref[...],
                         preferred_element_type=jnp.float32) + bf_ref[...]

        if transposed:
            # Small-action layout: actions on sublanes, batch on lanes.
            # One XLU transpose per block; stores stay lane-dense while the
            # output slab shrinks from 128 lanes to a_pad8 sublanes.
            logits = jnp.transpose(logits)[:a_pad8, :]     # (a_pad8, block_b)
            red_axis = 0
        else:
            red_axis = -1

        vals = {"logits": logits}
        if need_dist:
            # Categorical(logits=...): exact softmax.  probs = exp(log_probs)
            # so probs is consistent with log_probs and sums to 1 within f32
            # rounding (no approximate reciprocal).
            m = jnp.max(logits, axis=red_axis, keepdims=True)
            p_un = jnp.exp(logits - m)
            s = jnp.sum(p_un, axis=red_axis, keepdims=True)
            logp = logits - (m + jnp.log(s))
            vals["log_probs"] = logp
            if "probs" in outputs:
                vals["probs"] = jnp.exp(logp)

        # All streams packed into one output block -> one DMA per grid step.
        for slot, name in enumerate(outputs):
            out_ref[slot] = vals[name].astype(out_dtype)

    return kernel


def _pad_params(params, compute_dtype):
    """Zero-pad obs/hidden/action dims to hardware-friendly sizes; cast weights."""
    obs_dim, hidden = params["w1"].shape
    action_size = params["wf"].shape[1]
    obs_pad = _round_up(obs_dim, _LANE)
    h_pad = _round_up(hidden, _LANE)
    a_pad = _round_up(action_size, _LANE)

    def pad2(a, rows, cols, col_value=0.0):
        return jnp.pad(a, ((0, rows - a.shape[0]), (0, cols - a.shape[1])),
                       constant_values=col_value)

    w1 = pad2(params["w1"], obs_pad, h_pad).astype(compute_dtype)
    b1 = pad2(params["b1"], 1, h_pad).astype(jnp.float32)
    w2 = pad2(params["w2"], h_pad, h_pad).astype(compute_dtype)
    b2 = pad2(params["b2"], 1, h_pad).astype(jnp.float32)
    wf = pad2(params["wf"], h_pad, a_pad).astype(compute_dtype)
    bf = pad2(params["bf"], 1, a_pad, col_value=_NEG_INF).astype(jnp.float32)
    return (w1, b1, w2, b2, wf, bf), (obs_dim, obs_pad, h_pad, action_size, a_pad)


def _vmem_capacity_bytes():
    try:
        return int(pltpu.get_tpu_info().vmem_capacity_bytes)
    except Exception:
        return 64 * 1024 * 1024   # conservative (v7x-sized) fallback


def _pick_block_b(B, block_b, granule, vmem_capacity):
    if block_b is None:
        # Bigger default batch tiles on 128-MiB-VMEM chips (v5e/v6e); 512 on v7x.
        block_b = 1024 if vmem_capacity >= 96 * 1024 * 1024 else 512
    block_b = min(block_b, B)
    if block_b < B:
        block_b = max(granule, (block_b // granule) * granule)
    block_b = min(block_b, B)
    # v7x megacore: guarantee >=2 grid blocks (both TensorCores busy under
    # dimension_semantics=("parallel",)) whenever the batch is big enough to
    # split at this layout's granularity.  Harmless on 1-TC chips.
    if pl.cdiv(B, block_b) < 2 and B >= 2 * granule:
        block_b = _round_up(pl.cdiv(B, 2), granule)
    return block_b


def categorical_policy_forward(
    x,
    params,
    *,
    block_b=None,
    outputs=("logits", "log_probs", "probs"),
    out_dtype=jnp.float32,
    compute_dtype=jnp.bfloat16,
    transposed_head=None,
):
    """Fused CategoricalPolicy forward.

    Args:
      x: [B, obs_dim] float32 observations.
      params: dict (w1, b1, w2, b2, wf, bf), Linear weights in [in, out] layout.
      block_b: batch rows per grid step (default: generation-aware).
      outputs: subset of ("logits", "log_probs", "probs"), in return order.
      out_dtype: dtype of the emitted streams (bf16 halves output HBM bytes).
      compute_dtype: MXU input dtype for x / weights (f32 accumulation).
      transposed_head: force/disable the small-action transposed output layout
        (default: enabled when action_size <= 16).

    Returns:
      A single array if one output is requested, else a tuple, each
      [B, action_size] in `out_dtype`.
    """
    outputs = tuple(outputs)
    assert len(outputs) >= 1 and all(o in _VALID_OUTPUTS for o in outputs)
    B, obs_dim = x.shape

    (w1, b1, w2, b2, wf, bf), dims = _pad_params(params, compute_dtype)
    obs_dim_p, obs_pad, h_pad, action_size, a_pad = dims
    assert obs_dim == obs_dim_p
    a_pad8 = _round_up(action_size, _SUBLANE)

    if transposed_head is None:
        transposed_head = action_size <= 16
    n_out = len(outputs)

    granule = _LANE if transposed_head else _SUBLANE
    block_b = _pick_block_b(B, block_b, granule, _vmem_capacity_bytes())
    nb = pl.cdiv(B, block_b)

    # Zero-pad observations to 128 lanes (zero rows in w1 keep results
    # identical) and cast to the MXU input dtype (halves the x-tile DMA).
    x_pad = x
    if obs_pad != obs_dim:
        x_pad = jnp.pad(x_pad, ((0, 0), (0, obs_pad - obs_dim)))
    x_pad = x_pad.astype(compute_dtype)

    x_spec = pl.BlockSpec((block_b, obs_pad), lambda i: (i, 0))

    if transposed_head:
        out_shape = jax.ShapeDtypeStruct((n_out, a_pad8, B), out_dtype)
        out_spec = pl.BlockSpec((n_out, a_pad8, block_b), lambda i: (0, 0, i))
        out_block_elems = a_pad8 * block_b
    else:
        out_shape = jax.ShapeDtypeStruct((n_out, B, a_pad), out_dtype)
        out_spec = pl.BlockSpec((n_out, block_b, a_pad), lambda i: (0, i, 0))
        out_block_elems = block_b * a_pad

    # VMEM budget from the actual tile sizes: weights resident once,
    # x tile + packed output tile double-buffered, 2x headroom; capped so it
    # never exceeds v7x's physical VMEM.
    esz = lambda a: a.size * a.dtype.itemsize
    weight_bytes = sum(esz(a) for a in (w1, b1, w2, b2, wf, bf))
    io_bytes = 2 * (block_b * obs_pad * jnp.dtype(compute_dtype).itemsize
                    + n_out * out_block_elems * jnp.dtype(out_dtype).itemsize)
    vmem_limit = min(max(2 * (weight_bytes + io_bytes), 16 * 1024 * 1024),
                     64 * 1024 * 1024)

    kernel = _make_kernel(outputs, out_dtype, transposed_head, a_pad8)

    def _call(single_buffer_weights):
        if single_buffer_weights and hasattr(pl, "Buffered"):
            # Resident blocks never change -> single-buffer them (halves their
            # VMEM footprint; most valuable on v7x's 64 MiB VMEM).
            resident = lambda a: pl.BlockSpec(a.shape, lambda i: (0, 0),
                                              pipeline_mode=pl.Buffered(1))
        else:
            resident = lambda a: pl.BlockSpec(a.shape, lambda i: (0, 0))
        grid_spec = pltpu.PrefetchScalarGridSpec(
            num_scalar_prefetch=0,
            grid=(nb,),
            in_specs=[x_spec, resident(w1), resident(b1), resident(w2),
                      resident(b2), resident(wf), resident(bf)],
            out_specs=out_spec,
        )
        return pl.pallas_call(
            kernel,
            out_shape=out_shape,
            grid_spec=grid_spec,
            compiler_params=pltpu.CompilerParams(
                dimension_semantics=("parallel",),
                vmem_limit_bytes=int(vmem_limit),
            ),
        )(x_pad, w1, b1, w2, b2, wf, bf)

    global _BUFFERED1_SUPPORTED
    if _BUFFERED1_SUPPORTED is False:
        packed = _call(False)
    else:
        try:
            packed = _call(True)
            _BUFFERED1_SUPPORTED = True
        except Exception:
            # pl.Buffered(1) rejected by this jax/backend combo: fall back to
            # default double-buffered resident weights (still correct).
            _BUFFERED1_SUPPORTED = False
            packed = _call(False)

    # Split the packed streams and trim padding.  With the transposed layout
    # the trimmed slab is tiny (a_pad8 rows); in production keep the whole
    # forward under one jit so these slices fuse with downstream consumers.
    results = []
    for slot in range(n_out):
        arr = packed[slot]
        if transposed_head:
            arr = arr[:action_size, :].T          # -> (B, action_size)
        else:
            arr = arr[:, :action_size]
        results.append(arr)
    return results[0] if n_out == 1 else tuple(results)


def init_params(key, obs_dim, hidden_size, action_size):
    """Deterministic synthetic parameter init (Linear weights in [in, out])."""
    k1, k2, k3, k4, k5, k6 = jax.random.split(key, 6)

    def lin(kw, kb, fan_in, fan_out):
        bound = 1.0 / jnp.sqrt(jnp.float32(fan_in))
        w = jax.random.uniform(kw, (fan_in, fan_out), jnp.float32, -bound, bound)
        b = jax.random.uniform(kb, (1, fan_out), jnp.float32, -bound, bound)
        return w, b

    w1, b1 = lin(k1, k2, obs_dim, hidden_size)
    w2, b2 = lin(k3, k4, hidden_size, hidden_size)
    wf, bf = lin(k5, k6, hidden_size, action_size)
    return {"w1": w1, "b1": b1, "w2": w2, "b2": b2, "wf": wf, "bf": bf}


def _reference(x, p):
    """Pure-JAX reference replicating the kernel's bf16-input / f32-accum math."""
    q = lambda a: a.astype(jnp.bfloat16).astype(jnp.float32)
    h = jnp.maximum(jnp.dot(q(x), q(p["w1"])) + p["b1"], 0.0)
    h = jnp.maximum(jnp.dot(q(h), q(p["w2"])) + p["b2"], 0.0)
    logits = jnp.dot(q(h), q(p["wf"])) + p["bf"]
    logp = logits - jax.scipy.special.logsumexp(logits, axis=-1, keepdims=True)
    return logits, logp, jnp.exp(logp)


if __name__ == "__main__":
    key = jax.random.PRNGKey(0)
    kx, kp = jax.random.split(key)

    batch, obs_dim, hidden_size, action_size = 64, 32, 32, 6

    x = jax.random.normal(kx, (batch, obs_dim), dtype=jnp.float32)
    params = init_params(kp, obs_dim, hidden_size, action_size)
    ref_logits, ref_logp, ref_probs = _reference(x, params)

    # 1) Full Categorical materialization, generic 128-lane padded layout
    #    (block_b=32 -> 2 grid steps: exercises resident weights + batch grid).
    logits, log_probs, probs = categorical_policy_forward(
        x, params, block_b=32, transposed_head=False)
    jax.block_until_ready((logits, log_probs, probs))
    assert logits.shape == (batch, action_size)
    assert jnp.allclose(logits, ref_logits, atol=2e-4, rtol=2e-4)
    assert jnp.allclose(log_probs, ref_logp, atol=2e-4, rtol=2e-4)
    assert jnp.allclose(probs, ref_probs, atol=2e-4, rtol=2e-4)
    assert jnp.allclose(jnp.sum(probs, axis=-1), 1.0, atol=1e-3)

    # 2) Small-action transposed output layout (default for action_size<=16):
    #    actions on sublanes, batch on lanes -> ~16x fewer output HBM bytes.
    logits_t, log_probs_t, probs_t = categorical_policy_forward(x, params)
    jax.block_until_ready((logits_t, log_probs_t, probs_t))
    assert logits_t.shape == (batch, action_size)
    assert jnp.allclose(logits_t, ref_logits, atol=2e-4, rtol=2e-4)
    assert jnp.allclose(log_probs_t, ref_logp, atol=2e-4, rtol=2e-4)
    assert jnp.allclose(probs_t, ref_probs, atol=2e-4, rtol=2e-4)
    assert jnp.allclose(jnp.sum(probs_t, axis=-1), 1.0, atol=1e-3)

    # 3) Logits-only fast path (single packed output stream).
    logits_fast = categorical_policy_forward(x, params, outputs=("logits",))
    jax.block_until_ready(logits_fast)
    assert jnp.allclose(logits_fast, ref_logits, atol=2e-4, rtol=2e-4)

    # 4) Distribution-only path with bf16 outputs (drops the raw-logits stream
    #    and halves the remaining output bytes).
    logp16, probs16 = categorical_policy_forward(
        x, params, outputs=("log_probs", "probs"), out_dtype=jnp.bfloat16)
    jax.block_until_ready((logp16, probs16))
    assert probs16.dtype == jnp.bfloat16 and probs16.shape == (batch, action_size)
    assert jnp.allclose(probs16.astype(jnp.float32), ref_probs,
                        atol=1e-2, rtol=1e-2)

    print("KERNEL_OK")
</pallas_src>

<mosaic_0001>
module attributes {stable_mosaic.version = 11 : i64} {
  func.func @kernel(%arg0: i32, %arg1: memref<32x128xbf16, #tpu.memory_space<vmem>>, %arg2: memref<128x128xbf16, #tpu.memory_space<vmem>>, %arg3: memref<1x128xf32, #tpu.memory_space<vmem>>, %arg4: memref<128x128xbf16, #tpu.memory_space<vmem>>, %arg5: memref<1x128xf32, #tpu.memory_space<vmem>>, %arg6: memref<128x128xbf16, #tpu.memory_space<vmem>>, %arg7: memref<1x128xf32, #tpu.memory_space<vmem>>, %arg8: memref<3x32x128xf32, #tpu.memory_space<vmem>>) attributes {dimension_semantics = [#tpu.dimension_semantics<parallel>], iteration_bounds = array<i64: 2>, scalar_prefetch = 0 : i64, scratch_operands = 0 : i64, tpu.core_type = #tpu.core_type<tc>, window_params = [{transform_indices = @transform_0, window_bounds = array<i64: 32, 128>}, {pipeline_mode = #tpu.pipeline_mode<synchronous>, transform_indices = @transform_1, window_bounds = array<i64: 128, 128>}, {pipeline_mode = #tpu.pipeline_mode<synchronous>, transform_indices = @transform_2, window_bounds = array<i64: 1, 128>}, {pipeline_mode = #tpu.pipeline_mode<synchronous>, transform_indices = @transform_3, window_bounds = array<i64: 128, 128>}, {pipeline_mode = #tpu.pipeline_mode<synchronous>, transform_indices = @transform_4, window_bounds = array<i64: 1, 128>}, {pipeline_mode = #tpu.pipeline_mode<synchronous>, transform_indices = @transform_5, window_bounds = array<i64: 128, 128>}, {pipeline_mode = #tpu.pipeline_mode<synchronous>, transform_indices = @transform_6, window_bounds = array<i64: 1, 128>}, {transform_indices = @transform_7, window_bounds = array<i64: 3, 32, 128>}]} {
    %c0 = arith.constant 0 : index
    %c0_0 = arith.constant 0 : index
    %0 = vector.load %arg1[%c0, %c0_0] : memref<32x128xbf16, #tpu.memory_space<vmem>>, vector<32x128xbf16>
    %c0_1 = arith.constant 0 : index
    %c0_2 = arith.constant 0 : index
    %1 = vector.load %arg2[%c0_1, %c0_2] : memref<128x128xbf16, #tpu.memory_space<vmem>>, vector<128x128xbf16>
    %cst = arith.constant dense<0.000000e+00> : vector<32x128xf32>
    %2 = tpu.matmul %0, %1, %cst {dimension_numbers = #tpu.dot_dimension_numbers<[1], [0], [0], [1], [0, 0, 1, 1], [], []>} : vector<32x128xbf16>, vector<128x128xbf16>, vector<32x128xf32> -> vector<32x128xf32>
    %c0_3 = arith.constant 0 : index
    %c0_4 = arith.constant 0 : index
    %3 = vector.load %arg3[%c0_3, %c0_4] : memref<1x128xf32, #tpu.memory_space<vmem>>, vector<1x128xf32>
    %4 = vector.broadcast %3 : vector<1x128xf32> to vector<32x128xf32>
    %5 = arith.addf %2, %4 : vector<32x128xf32>
    %cst_5 = arith.constant 0.000000e+00 : f32
    %6 = vector.broadcast %cst_5 : f32 to vector<32x128xf32>
    %7 = arith.maximumf %5, %6 : vector<32x128xf32>
    %8 = arith.truncf %7 : vector<32x128xf32> to vector<32x128xbf16>
    %c0_6 = arith.constant 0 : index
    %c0_7 = arith.constant 0 : index
    %9 = vector.load %arg4[%c0_6, %c0_7] : memref<128x128xbf16, #tpu.memory_space<vmem>>, vector<128x128xbf16>
    %cst_8 = arith.constant dense<0.000000e+00> : vector<32x128xf32>
    %10 = tpu.matmul %8, %9, %cst_8 {dimension_numbers = #tpu.dot_dimension_numbers<[1], [0], [0], [1], [0, 0, 1, 1], [], []>} : vector<32x128xbf16>, vector<128x128xbf16>, vector<32x128xf32> -> vector<32x128xf32>
    %c0_9 = arith.constant 0 : index
    %c0_10 = arith.constant 0 : index
    %11 = vector.load %arg5[%c0_9, %c0_10] : memref<1x128xf32, #tpu.memory_space<vmem>>, vector<1x128xf32>
    %12 = vector.broadcast %11 : vector<1x128xf32> to vector<32x128xf32>
    %13 = arith.addf %10, %12 : vector<32x128xf32>
    %cst_11 = arith.constant 0.000000e+00 : f32
    %14 = vector.broadcast %cst_11 : f32 to vector<32x128xf32>
    %15 = arith.maximumf %13, %14 : vector<32x128xf32>
    %16 = arith.truncf %15 : vector<32x128xf32> to vector<32x128xbf16>
    %c0_12 = arith.constant 0 : index
    %c0_13 = arith.constant 0 : index
    %17 = vector.load %arg6[%c0_12, %c0_13] : memref<128x128xbf16, #tpu.memory_space<vmem>>, vector<128x128xbf16>
    %cst_14 = arith.constant dense<0.000000e+00> : vector<32x128xf32>
    %18 = tpu.matmul %16, %17, %cst_14 {dimension_numbers = #tpu.dot_dimension_numbers<[1], [0], [0], [1], [0, 0, 1, 1], [], []>} : vector<32x128xbf16>, vector<128x128xbf16>, vector<32x128xf32> -> vector<32x128xf32>
    %c0_15 = arith.constant 0 : index
    %c0_16 = arith.constant 0 : index
    %19 = vector.load %arg7[%c0_15, %c0_16] : memref<1x128xf32, #tpu.memory_space<vmem>>, vector<1x128xf32>
    %20 = vector.broadcast %19 : vector<1x128xf32> to vector<32x128xf32>
    %21 = arith.addf %18, %20 : vector<32x128xf32>
    %cst_17 = arith.constant dense<0xFF800000> : vector<32xf32>
    %22 = vector.multi_reduction <maximumf>, %21, %cst_17 [1] : vector<32x128xf32> to vector<32xf32>
    %23 = vector.shape_cast %22 : vector<32xf32> to vector<32x1xf32>
    %24 = vector.broadcast %23 : vector<32x1xf32> to vector<32x128xf32>
    %25 = arith.subf %21, %24 : vector<32x128xf32>
    %26 = math.exp %25 : vector<32x128xf32>
    %cst_18 = arith.constant dense<0.000000e+00> : vector<32xf32>
    %27 = vector.multi_reduction <add>, %26, %cst_18 [1] : vector<32x128xf32> to vector<32xf32>
    %28 = vector.shape_cast %27 : vector<32xf32> to vector<32x1xf32>
    %29 = math.log %28 : vector<32x1xf32>
    %30 = arith.addf %23, %29 : vector<32x1xf32>
    %31 = vector.broadcast %30 : vector<32x1xf32> to vector<32x128xf32>
    %32 = arith.subf %21, %31 : vector<32x128xf32>
    %33 = math.exp %32 : vector<32x128xf32>
    %c0_19 = arith.constant 0 : index
    %c0_20 = arith.constant 0 : index
    %c0_21 = arith.constant 0 : index
    %34 = vector.load %arg8[%c0_19, %c0_20, %c0_21] : memref<3x32x128xf32, #tpu.memory_space<vmem>>, vector<1x32x128xf32>
    %35 = vector.shape_cast %34 : vector<1x32x128xf32> to vector<32x128xf32>
    %36 = vector.shape_cast %21 : vector<32x128xf32> to vector<1x32x128xf32>
    tpu.vector_store %arg8[%c0_19, %c0_20, %c0_21], %36 {strides = array<i32>} : memref<3x32x128xf32, #tpu.memory_space<vmem>>, vector<1x32x128xf32>,
    %c1 = arith.constant 1 : index
    %c0_22 = arith.constant 0 : index
    %c0_23 = arith.constant 0 : index
    %37 = vector.load %arg8[%c1, %c0_22, %c0_23] : memref<3x32x128xf32, #tpu.memory_space<vmem>>, vector<1x32x128xf32>
    %38 = vector.shape_cast %37 : vector<1x32x128xf32> to vector<32x128xf32>
    %39 = vector.shape_cast %32 : vector<32x128xf32> to vector<1x32x128xf32>
    tpu.vector_store %arg8[%c1, %c0_22, %c0_23], %39 {strides = array<i32>} : memref<3x32x128xf32, #tpu.memory_space<vmem>>, vector<1x32x128xf32>,
    %c2 = arith.constant 2 : index
    %c0_24 = arith.constant 0 : index
    %c0_25 = arith.constant 0 : index
    %40 = vector.load %arg8[%c2, %c0_24, %c0_25] : memref<3x32x128xf32, #tpu.memory_space<vmem>>, vector<1x32x128xf32>
    %41 = vector.shape_cast %40 : vector<1x32x128xf32> to vector<32x128xf32>
    %42 = vector.shape_cast %33 : vector<32x128xf32> to vector<1x32x128xf32>
    tpu.vector_store %arg8[%c2, %c0_24, %c0_25], %42 {strides = array<i32>} : memref<3x32x128xf32, #tpu.memory_space<vmem>>, vector<1x32x128xf32>,
    return
  }
  func.func @transform_0(%arg0: i32) -> (i32, i32) {
    %c0_i32 = arith.constant 0 : i32
    %c0_i32_0 = arith.constant 0 : i32
    return %arg0, %c0_i32 : i32, i32
  }
  func.func @transform_1(%arg0: i32) -> (i32, i32) {
    %c0_i32 = arith.constant 0 : i32
    %c0_i32_0 = arith.constant 0 : i32
    %c0_i32_1 = arith.constant 0 : i32
    return %c0_i32, %c0_i32_0 : i32, i32
  }
  func.func @transform_2(%arg0: i32) -> (i32, i32) {
    %c0_i32 = arith.constant 0 : i32
    %c0_i32_0 = arith.constant 0 : i32
    %c0_i32_1 = arith.constant 0 : i32
    return %c0_i32, %c0_i32_0 : i32, i32
  }
  func.func @transform_3(%arg0: i32) -> (i32, i32) {
    %c0_i32 = arith.constant 0 : i32
    %c0_i32_0 = arith.constant 0 : i32
    %c0_i32_1 = arith.constant 0 : i32
    return %c0_i32, %c0_i32_0 : i32, i32
  }
  func.func @transform_4(%arg0: i32) -> (i32, i32) {
    %c0_i32 = arith.constant 0 : i32
    %c0_i32_0 = arith.constant 0 : i32
    %c0_i32_1 = arith.constant 0 : i32
    return %c0_i32, %c0_i32_0 : i32, i32
  }
  func.func @transform_5(%arg0: i32) -> (i32, i32) {
    %c0_i32 = arith.constant 0 : i32
    %c0_i32_0 = arith.constant 0 : i32
    %c0_i32_1 = arith.constant 0 : i32
    return %c0_i32, %c0_i32_0 : i32, i32
  }
  func.func @transform_6(%arg0: i32) -> (i32, i32) {
    %c0_i32 = arith.constant 0 : i32
    %c0_i32_0 = arith.constant 0 : i32
    %c0_i32_1 = arith.constant 0 : i32
    return %c0_i32, %c0_i32_0 : i32, i32
  }
  func.func @transform_7(%arg0: i32) -> (i32, i32, i32) {
    %c0_i32 = arith.constant 0 : i32
    %c0_i32_0 = arith.constant 0 : i32
    %c0_i32_1 = arith.constant 0 : i32
    return %c0_i32, %arg0, %c0_i32_0 : i32, i32, i32
  }
}

module attributes {stable_mosaic.version = 11 : i64} {
  func.func @kernel(%arg0: i32, %arg1: memref<32x128xbf16, #tpu.memory_space<vmem>>, %arg2: memref<128x128xbf16, #tpu.memory_space<vmem>>, %arg3: memref<1x128xf32, #tpu.memory_space<vmem>>, %arg4: memref<128x128xbf16, #tpu.memory_space<vmem>>, %arg5: memref<1x128xf32, #tpu.memory_space<vmem>>, %arg6: memref<128x128xbf16, #tpu.memory_space<vmem>>, %arg7: memref<1x128xf32, #tpu.memory_space<vmem>>, %arg8: memref<3x32x128xf32, #tpu.memory_space<vmem>>) attributes {dimension_semantics = [#tpu.dimension_semantics<parallel>], iteration_bounds = array<i64: 2>, scalar_prefetch = 0 : i64, scratch_operands = 0 : i64, tpu.core_type = #tpu.core_type<tc>, window_params = [{transform_indices = @transform_0, window_bounds = array<i64: 32, 128>}, {pipeline_mode = #tpu.pipeline_mode<synchronous>, transform_indices = @transform_1, window_bounds = array<i64: 128, 128>}, {pipeline_mode = #tpu.pipeline_mode<synchronous>, transform_indices = @transform_2, window_bounds = array<i64: 1, 128>}, {pipeline_mode = #tpu.pipeline_mode<synchronous>, transform_indices = @transform_3, window_bounds = array<i64: 128, 128>}, {pipeline_mode = #tpu.pipeline_mode<synchronous>, transform_indices = @transform_4, window_bounds = array<i64: 1, 128>}, {pipeline_mode = #tpu.pipeline_mode<synchronous>, transform_indices = @transform_5, window_bounds = array<i64: 128, 128>}, {pipeline_mode = #tpu.pipeline_mode<synchronous>, transform_indices = @transform_6, window_bounds = array<i64: 1, 128>}, {transform_indices = @transform_7, window_bounds = array<i64: 3, 32, 128>}]} {
    %c0 = arith.constant 0 : index
    %c0_0 = arith.constant 0 : index
    %0 = vector.load %arg1[%c0, %c0_0] : memref<32x128xbf16, #tpu.memory_space<vmem>>, vector<32x128xbf16>
    %c0_1 = arith.constant 0 : index
    %c0_2 = arith.constant 0 : index
    %1 = vector.load %arg2[%c0_1, %c0_2] : memref<128x128xbf16, #tpu.memory_space<vmem>>, vector<128x128xbf16>
    %cst = arith.constant dense<0.000000e+00> : vector<32x128xf32>
    %2 = tpu.matmul %0, %1, %cst {dimension_numbers = #tpu.dot_dimension_numbers<[1], [0], [0], [1], [0, 0, 1, 1], [], []>} : vector<32x128xbf16>, vector<128x128xbf16>, vector<32x128xf32> -> vector<32x128xf32>
    %c0_3 = arith.constant 0 : index
    %c0_4 = arith.constant 0 : index
    %3 = vector.load %arg3[%c0_3, %c0_4] : memref<1x128xf32, #tpu.memory_space<vmem>>, vector<1x128xf32>
    %4 = vector.broadcast %3 : vector<1x128xf32> to vector<32x128xf32>
    %5 = arith.addf %2, %4 : vector<32x128xf32>
    %cst_5 = arith.constant 0.000000e+00 : f32
    %6 = vector.broadcast %cst_5 : f32 to vector<32x128xf32>
    %7 = arith.maximumf %5, %6 : vector<32x128xf32>
    %8 = arith.truncf %7 : vector<32x128xf32> to vector<32x128xbf16>
    %c0_6 = arith.constant 0 : index
    %c0_7 = arith.constant 0 : index
    %9 = vector.load %arg4[%c0_6, %c0_7] : memref<128x128xbf16, #tpu.memory_space<vmem>>, vector<128x128xbf16>
    %cst_8 = arith.constant dense<0.000000e+00> : vector<32x128xf32>
    %10 = tpu.matmul %8, %9, %cst_8 {dimension_numbers = #tpu.dot_dimension_numbers<[1], [0], [0], [1], [0, 0, 1, 1], [], []>} : vector<32x128xbf16>, vector<128x128xbf16>, vector<32x128xf32> -> vector<32x128xf32>
    %c0_9 = arith.constant 0 : index
    %c0_10 = arith.constant 0 : index
    %11 = vector.load %arg5[%c0_9, %c0_10] : memref<1x128xf32, #tpu.memory_space<vmem>>, vector<1x128xf32>
    %12 = vector.broadcast %11 : vector<1x128xf32> to vector<32x128xf32>
    %13 = arith.addf %10, %12 : vector<32x128xf32>
    %cst_11 = arith.constant 0.000000e+00 : f32
    %14 = vector.broadcast %cst_11 : f32 to vector<32x128xf32>
    %15 = arith.maximumf %13, %14 : vector<32x128xf32>
    %16 = arith.truncf %15 : vector<32x128xf32> to vector<32x128xbf16>
    %c0_12 = arith.constant 0 : index
    %c0_13 = arith.constant 0 : index
    %17 = vector.load %arg6[%c0_12, %c0_13] : memref<128x128xbf16, #tpu.memory_space<vmem>>, vector<128x128xbf16>
    %cst_14 = arith.constant dense<0.000000e+00> : vector<32x128xf32>
    %18 = tpu.matmul %16, %17, %cst_14 {dimension_numbers = #tpu.dot_dimension_numbers<[1], [0], [0], [1], [0, 0, 1, 1], [], []>} : vector<32x128xbf16>, vector<128x128xbf16>, vector<32x128xf32> -> vector<32x128xf32>
    %c0_15 = arith.constant 0 : index
    %c0_16 = arith.constant 0 : index
    %19 = vector.load %arg7[%c0_15, %c0_16] : memref<1x128xf32, #tpu.memory_space<vmem>>, vector<1x128xf32>
    %20 = vector.broadcast %19 : vector<1x128xf32> to vector<32x128xf32>
    %21 = arith.addf %18, %20 : vector<32x128xf32>
    %cst_17 = arith.constant dense<0xFF800000> : vector<32xf32>
    %22 = vector.multi_reduction <maximumf>, %21, %cst_17 [1] : vector<32x128xf32> to vector<32xf32>
    %23 = vector.shape_cast %22 : vector<32xf32> to vector<32x1xf32>
    %24 = vector.broadcast %23 : vector<32x1xf32> to vector<32x128xf32>
    %25 = arith.subf %21, %24 : vector<32x128xf32>
    %26 = math.exp %25 : vector<32x128xf32>
    %cst_18 = arith.constant dense<0.000000e+00> : vector<32xf32>
    %27 = vector.multi_reduction <add>, %26, %cst_18 [1] : vector<32x128xf32> to vector<32xf32>
    %28 = vector.shape_cast %27 : vector<32xf32> to vector<32x1xf32>
    %29 = math.log %28 : vector<32x1xf32>
    %30 = arith.addf %23, %29 : vector<32x1xf32>
    %31 = vector.broadcast %30 : vector<32x1xf32> to vector<32x128xf32>
    %32 = arith.subf %21, %31 : vector<32x128xf32>
    %33 = math.exp %32 : vector<32x128xf32>
    %c0_19 = arith.constant 0 : index
    %c0_20 = arith.constant 0 : index
    %c0_21 = arith.constant 0 : index
    %34 = vector.load %arg8[%c0_19, %c0_20, %c0_21] : memref<3x32x128xf32, #tpu.memory_space<vmem>>, vector<1x32x128xf32>
    %35 = vector.shape_cast %34 : vector<1x32x128xf32> to vector<32x128xf32>
    %36 = vector.shape_cast %21 : vector<32x128xf32> to vector<1x32x128xf32>
    tpu.vector_store %arg8[%c0_19, %c0_20, %c0_21], %36 {strides = array<i32>} : memref<3x32x128xf32, #tpu.memory_space<vmem>>, vector<1x32x128xf32>,
    %c1 = arith.constant 1 : index
    %c0_22 = arith.constant 0 : index
    %c0_23 = arith.constant 0 : index
    %37 = vector.load %arg8[%c1, %c0_22, %c0_23] : memref<3x32x128xf32, #tpu.memory_space<vmem>>, vector<1x32x128xf32>
    %38 = vector.shape_cast %37 : vector<1x32x128xf32> to vector<32x128xf32>
    %39 = vector.shape_cast %32 : vector<32x128xf32> to vector<1x32x128xf32>
    tpu.vector_store %arg8[%c1, %c0_22, %c0_23], %39 {strides = array<i32>} : memref<3x32x128xf32, #tpu.memory_space<vmem>>, vector<1x32x128xf32>,
    %c2 = arith.constant 2 : index
    %c0_24 = arith.constant 0 : index
    %c0_25 = arith.constant 0 : index
    %40 = vector.load %arg8[%c2, %c0_24, %c0_25] : memref<3x32x128xf32, #tpu.memory_space<vmem>>, vector<1x32x128xf32>
    %41 = vector.shape_cast %40 : vector<1x32x128xf32> to vector<32x128xf32>
    %42 = vector.shape_cast %33 : vector<32x128xf32> to vector<1x32x128xf32>
    tpu.vector_store %arg8[%c2, %c0_24, %c0_25], %42 {strides = array<i32>} : memref<3x32x128xf32, #tpu.memory_space<vmem>>, vector<1x32x128xf32>,
    return
  }
  func.func @transform_0(%arg0: i32) -> (i32, i32) {
    %c0_i32 = arith.constant 0 : i32
    %c0_i32_0 = arith.constant 0 : i32
    return %arg0, %c0_i32 : i32, i32
  }
  func.func @transform_1(%arg0: i32) -> (i32, i32) {
    %c0_i32 = arith.constant 0 : i32
    %c0_i32_0 = arith.constant 0 : i32
    %c0_i32_1 = arith.constant 0 : i32
    return %c0_i32, %c0_i32_0 : i32, i32
  }
  func.func @transform_2(%arg0: i32) -> (i32, i32) {
    %c0_i32 = arith.constant 0 : i32
    %c0_i32_0 = arith.constant 0 : i32
    %c0_i32_1 = arith.constant 0 : i32
    return %c0_i32, %c0_i32_0 : i32, i32
  }
  func.func @transform_3(%arg0: i32) -> (i32, i32) {
    %c0_i32 = arith.constant 0 : i32
    %c0_i32_0 = arith.constant 0 : i32
    %c0_i32_1 = arith.constant 0 : i32
    return %c0_i32, %c0_i32_0 : i32, i32
  }
  func.func @transform_4(%arg0: i32) -> (i32, i32) {
    %c0_i32 = arith.constant 0 : i32
    %c0_i32_0 = arith.constant 0 : i32
    %c0_i32_1 = arith.constant 0 : i32
    return %c0_i32, %c0_i32_0 : i32, i32
  }
  func.func @transform_5(%arg0: i32) -> (i32, i32) {
    %c0_i32 = arith.constant 0 : i32
    %c0_i32_0 = arith.constant 0 : i32
    %c0_i32_1 = arith.constant 0 : i32
    return %c0_i32, %c0_i32_0 : i32, i32
  }
  func.func @transform_6(%arg0: i32) -> (i32, i32) {
    %c0_i32 = arith.constant 0 : i32
    %c0_i32_0 = arith.constant 0 : i32
    %c0_i32_1 = arith.constant 0 : i32
    return %c0_i32, %c0_i32_0 : i32, i32
  }
  func.func @transform_7(%arg0: i32) -> (i32, i32, i32) {
    %c0_i32 = arith.constant 0 : i32
    %c0_i32_0 = arith.constant 0 : i32
    %c0_i32_1 = arith.constant 0 : i32
    return %c0_i32, %arg0, %c0_i32_0 : i32, i32, i32
  }
}

</mosaic_0001>

<llo_original>
// kernel: tpu_custom_call.1
$region0: #{tpu_custom_call.1}
  #allocation0 [shape = 'u32[]', space=smem, size = 0x4, offset = 0x4, fixed_abs, tag = 'smem constant byte address 0x4 - core index']
  #allocation1 [shape = 'u32[72,128]{1,0:T(1,128)}', space=vmem, size = 0x9000, scoped, tag = 'internal scratch']
  #allocation11 [shape = 's32[]', space=sflag, size = 0x4, offset = 0, fixed_abs, tag = 'sflag constant byte address 0x0 - dummy sync flag']
  %s0 = inlined_call_operand.hbm [shape: bf16[64,128], index: 0, kind: input, shape index: {}]
  %s1 = inlined_call_operand.hbm [shape: bf16[128,128], index: 1, kind: input, shape index: {}]
  %s2 = inlined_call_operand.vmem [shape: f32[1,128], index: 2, kind: input, shape index: {}]
  %s3 = inlined_call_operand.hbm [shape: bf16[128,128], index: 3, kind: input, shape index: {}]
  %s4 = inlined_call_operand.vmem [shape: f32[1,128], index: 4, kind: input, shape index: {}]
  %s5 = inlined_call_operand.hbm [shape: bf16[128,128], index: 5, kind: input, shape index: {}]
  %s6 = inlined_call_operand.vmem [shape: f32[1,128], index: 6, kind: input, shape index: {}]
  %s7 = inlined_call_operand.hbm [shape: f32[3,64,128], index: 7, kind: output, shape index: {}]
  %s8 = sld [smem:[#allocation0]]
  $region77: #{tpu_custom_call.1} parent=0
    _
  %s10 = ssub.s32 1, %s8
  %s11 = scalar_select 0, %s10, %s8
  $region1: #{tpu_custom_call.1} parent=0
    #allocation2 [shape = 'u8[16384]{0}', space=vmem, size = 0x4000, scoped, tag = 'input window, operand 0']
    #allocation3 [shape = 's32[2]{0}', space=sflag, size = 0x8, scoped, tag = 'scoped memory for tpu_custom_call.1']
    #allocation4 [shape = 's32[2]{0}', space=sflag, size = 0x8, scoped, tag = 'scoped memory for tpu_custom_call.1']
    #allocation5 [shape = 'u8[32768]{0}', space=vmem, size = 0x8000, scoped, tag = 'input window, operand 1, single buffered']
    #allocation6 [shape = 's32[1]{0}', space=sflag, size = 0x4, scoped, tag = 'scoped memory for tpu_custom_call.1']
    #allocation7 [shape = 'u8[32768]{0}', space=vmem, size = 0x8000, scoped, tag = 'input window, operand 3, single buffered']
    #allocation8 [shape = 'u8[32768]{0}', space=vmem, size = 0x8000, scoped, tag = 'input window, operand 5, single buffered']
    #allocation9 [shape = 's32[1]{0}', space=sflag, size = 0x4, scoped, tag = 'scoped memory for tpu_custom_call.1']
    #allocation10 [shape = 'u8[98304]{0}', space=vmem, size = 0x18000, scoped, tag = 'output window, operand 0']
    %12 = vsyncpa [#allocation3], 0
    %s13 = scalar_lea.sflag [#allocation3], 1
    %14 = vsyncpa %s13, 0
    %15 = vsyncpa [#allocation6], 0
    %16 = vsyncpa [#allocation9], 0
    %17 = vsyncpa [#allocation4], 0
    %s18 = scalar_lea.sflag [#allocation4], 1
    %19 = vsyncpa %s18, 0
    loop: start=0, step=1, limit=4
    $region2: #{tpu_custom_call.1} parent=1 // loop_pre_header
      _
    $region3: #{tpu_custom_call.1} parent=1 // loop_header
      %s21 = sphi 0, %s25
      %p22 = scmp.ge.s32.totalorder %s21, 4
      %s31 = sphi 0, %s33
      %s34 = sphi 0, %s31
      %s35 = sphi 0, %s34
      %s51 = sphi 0, %s35
      %s55 = sphi 0, %s55
      %s57 = sphi 0, %s55
      %s58 = sphi 0, %s57
      %s72 = sphi 0, %s58
      %s76 = sphi 0, %s76
      %s78 = sphi 0, %s76
      %s79 = sphi 0, %s78
      %s93 = sphi 0, %s79
      %s97 = sphi 0, %s97
      %s99 = sphi 0, %s97
      %s100 = sphi 0, %s99
      %s114 = sphi 0, %s100
      %s118 = sphi 0, %s118
      %s120 = sphi 0, %s118
      %s121 = sphi 0, %s120
      %s135 = sphi 0, %s121
      %s139 = sphi 0, %s139
      %s141 = sphi 0, %s139
      %s142 = sphi 0, %s141
      %s156 = sphi 0, %s142
      %s160 = sphi 0, %s160
      %s162 = sphi 0, %s160
      %s163 = sphi 0, %s162
      %s177 = sphi 0, %s163
      %s183 = sphi 0, %s185
      %s186 = sphi 0, %s183
      %s187 = sphi 0, %s186
      %s203 = sphi 0, %s187
    $region4: #{tpu_custom_call.1} parent=1 // loop_header_branch
      %24 = sbr.rel (%p22) target = $region8
    $region5: #{tpu_custom_call.1} parent=1 // loop_body
      %s26 = ssub.s32 %s21, 1
      %s27 = ssub.s32 %s21, 2
      %s28 = sadd.s32 %s21, 1
      %s29 = ssub.s32 %s21, %s28
      %p30 = scmp.eq.s32.totalorder %s29, 0
      %s32 = sadd.s32 %s31, 1
      %s33 = scalar_select %p30, %s31, %s32
      %p36 = pneg %p30
      %p37 = scmp.eq.s32.totalorder %s21, 1
      %p38 = por %p36, %p37
      %p39 = scmp.ne.s32.totalorder %s31, %s34
      %p40 = scmp.eq.s32.totalorder %s21, 0
      %p41 = por %p39, %p40
      %p42 = scmp.ne.s32.totalorder %s31, %s34
      %p43 = scmp.eq.s32.totalorder %s26, 1
      %p44 = por %p42, %p43
      %p45 = scmp.ne.s32.totalorder %s34, %s35
      %p46 = scmp.eq.s32.totalorder %s26, 0
      %p47 = por %p45, %p46
      %p48 = scmp.ne.s32.totalorder %s34, %s35
      %p49 = scmp.eq.s32.totalorder %s27, 1
      %p50 = por %p48, %p49
      %p52 = scmp.ne.s32.totalorder %s35, %s51
      %p53 = scmp.eq.s32.totalorder %s27, 0
      %p54 = por %p52, %p53
      %s56 = sadd.s32 %s55, 1
      %p59 = scmp.eq.s32.totalorder %s21, 1
      %p60 = scmp.ne.s32.totalorder %s55, %s57
      %p61 = scmp.eq.s32.totalorder %s21, 0
      %p62 = por %p60, %p61
      %p63 = scmp.ne.s32.totalorder %s55, %s57
      %p64 = scmp.eq.s32.totalorder %s26, 1
      %p65 = por %p63, %p64
      %p66 = scmp.ne.s32.totalorder %s57, %s58
      %p67 = scmp.eq.s32.totalorder %s26, 0
      %p68 = por %p66, %p67
      %p69 = scmp.ne.s32.totalorder %s57, %s58
      %p70 = scmp.eq.s32.totalorder %s27, 1
      %p71 = por %p69, %p70
      %p73 = scmp.ne.s32.totalorder %s58, %s72
      %p74 = scmp.eq.s32.totalorder %s27, 0
      %p75 = por %p73, %p74
      %s77 = sadd.s32 %s76, 1
      %p80 = scmp.eq.s32.totalorder %s21, 1
      %p81 = scmp.ne.s32.totalorder %s76, %s78
      %p82 = scmp.eq.s32.totalorder %s21, 0
      %p83 = por %p81, %p82
      %p84 = scmp.ne.s32.totalorder %s76, %s78
      %p85 = scmp.eq.s32.totalorder %s26, 1
      %p86 = por %p84, %p85
      %p87 = scmp.ne.s32.totalorder %s78, %s79
      %p88 = scmp.eq.s32.totalorder %s26, 0
      %p89 = por %p87, %p88
      %p90 = scmp.ne.s32.totalorder %s78, %s79
      %p91 = scmp.eq.s32.totalorder %s27, 1
      %p92 = por %p90, %p91
      %p94 = scmp.ne.s32.totalorder %s79, %s93
      %p95 = scmp.eq.s32.totalorder %s27, 0
      %p96 = por %p94, %p95
      %s98 = sadd.s32 %s97, 1
      %p101 = scmp.eq.s32.totalorder %s21, 1
      %p102 = scmp.ne.s32.totalorder %s97, %s99
      %p103 = scmp.eq.s32.totalorder %s21, 0
      %p104 = por %p102, %p103
      %p105 = scmp.ne.s32.totalorder %s97, %s99
      %p106 = scmp.eq.s32.totalorder %s26, 1
      %p107 = por %p105, %p106
      %p108 = scmp.ne.s32.totalorder %s99, %s100
      %p109 = scmp.eq.s32.totalorder %s26, 0
      %p110 = por %p108, %p109
      %p111 = scmp.ne.s32.totalorder %s99, %s100
      %p112 = scmp.eq.s32.totalorder %s27, 1
      %p113 = por %p111, %p112
      %p115 = scmp.ne.s32.totalorder %s100, %s114
      %p116 = scmp.eq.s32.totalorder %s27, 0
      %p117 = por %p115, %p116
      %s119 = sadd.s32 %s118, 1
      %p122 = scmp.eq.s32.totalorder %s21, 1
      %p123 = scmp.ne.s32.totalorder %s118, %s120
      %p124 = scmp.eq.s32.totalorder %s21, 0
      %p125 = por %p123, %p124
      %p126 = scmp.ne.s32.totalorder %s118, %s120
      %p127 = scmp.eq.s32.totalorder %s26, 1
      %p128 = por %p126, %p127
      %p129 = scmp.ne.s32.totalorder %s120, %s121
      %p130 = scmp.eq.s32.totalorder %s26, 0
      %p131 = por %p129, %p130
      %p132 = scmp.ne.s32.totalorder %s120, %s121
      %p133 = scmp.eq.s32.totalorder %s27, 1
      %p134 = por %p132, %p133
      %p136 = scmp.ne.s32.totalorder %s121, %s135
      %p137 = scmp.eq.s32.totalorder %s27, 0
      %p138 = por %p136, %p137
      %s140 = sadd.s32 %s139, 1
      %p143 = scmp.eq.s32.totalorder %s21, 1
      %p144 = scmp.ne.s32.totalorder %s139, %s141
      %p145 = scmp.eq.s32.totalorder %s21, 0
      %p146 = por %p144, %p145
      %p147 = scmp.ne.s32.totalorder %s139, %s141
      %p148 = scmp.eq.s32.totalorder %s26, 1
      %p149 = por %p147, %p148
      %p150 = scmp.ne.s32.totalorder %s141, %s142
      %p151 = scmp.eq.s32.totalorder %s26, 0
      %p152 = por %p150, %p151
      %p153 = scmp.ne.s32.totalorder %s141, %s142
      %p154 = scmp.eq.s32.totalorder %s27, 1
      %p155 = por %p153, %p154
      %p157 = scmp.ne.s32.totalorder %s142, %s156
      %p158 = scmp.eq.s32.totalorder %s27, 0
      %p159 = por %p157, %p158
      %s161 = sadd.s32 %s160, 1
      %p164 = scmp.eq.s32.totalorder %s21, 1
      %p165 = scmp.ne.s32.totalorder %s160, %s162
      %p166 = scmp.eq.s32.totalorder %s21, 0
      %p167 = por %p165, %p166
      %p168 = scmp.ne.s32.totalorder %s160, %s162
      %p169 = scmp.eq.s32.totalorder %s26, 1
      %p170 = por %p168, %p169
      %p171 = scmp.ne.s32.totalorder %s162, %s163
      %p172 = scmp.eq.s32.totalorder %s26, 0
      %p173 = por %p171, %p172
      %p174 = scmp.ne.s32.totalorder %s162, %s163
      %p175 = scmp.eq.s32.totalorder %s27, 1
      %p176 = por %p174, %p175
      %p178 = scmp.ne.s32.totalorder %s163, %s177
      %p179 = scmp.eq.s32.totalorder %s27, 0
      %p180 = por %p178, %p179
      %s181 = ssub.s32 %s21, %s28
      %p182 = scmp.eq.s32.totalorder %s181, 0
      %s184 = sadd.s32 %s183, 1
      %s185 = scalar_select %p182, %s183, %s184
      %p188 = pneg %p182
      %p189 = scmp.eq.s32.totalorder %s21, 1
      %p190 = por %p188, %p189
      %p191 = scmp.ne.s32.totalorder %s183, %s186
      %p192 = scmp.eq.s32.totalorder %s21, 0
      %p193 = por %p191, %p192
      %p194 = scmp.ne.s32.totalorder %s183, %s186
      %p195 = scmp.eq.s32.totalorder %s26, 1
      %p196 = por %p194, %p195
      %p197 = scmp.ne.s32.totalorder %s186, %s187
      %p198 = scmp.eq.s32.totalorder %s26, 0
      %p199 = por %p197, %p198
      %p200 = scmp.ne.s32.totalorder %s186, %s187
      %p201 = scmp.eq.s32.totalorder %s27, 1
      %p202 = por %p200, %p201
      %p204 = scmp.ne.s32.totalorder %s187, %s203
      %p205 = scmp.eq.s32.totalorder %s27, 0
      %p206 = por %p204, %p205
      %p207 = scmp.le.s32.totalorder 1, %s21
      %p208 = scmp.lt.s32.totalorder %s21, 3
      %p209 = pnand %p207, %p208
      %p210 = pneg %p209
      // Predicated region
      $region9: #{tpu_custom_call.1} parent=5 // pred_check
        _
      $region10: #{tpu_custom_call.1} parent=5 // pred_check_branch
        %212 = sbr.rel (%p209) target = $region12
      $region11: #{tpu_custom_call.1} parent=5 // pred_region
        %s213 = ssub.s32 %s21, 1
        // Predicated region
        $region13: #{tpu_custom_call.1} parent=11 // pred_check
          %p214 = pneg %p68
        $region14: #{tpu_custom_call.1} parent=11 // pred_check_branch
          %216 = sbr.rel (%p214) target = $region16
        $region15: #{tpu_custom_call.1} parent=11 // pred_region
          %218 = vsyncadd [#allocation6], 0
          %s219 = sshll.u32 %s1, 4
          %s220 = int_to_ptr.hbm [resolvable:$true] %s219
          %s221 = sshll.u32 [#allocation5], 4
          %s222 = int_to_ptr.vmem [resolvable:$true] %s221
          %227 = dma.hbm_to_vmem [thread:$0]  %s220, 1024, %s222, [#allocation6], 64, 64, 4
        $region16: #{tpu_custom_call.1} parent=11 // pred_fallthru
          _
        // Predicated region
        $region17: #{tpu_custom_call.1} parent=11 // pred_check
          %p228 = pneg %p89
        $region18: #{tpu_custom_call.1} parent=11 // pred_check_branch
          %230 = sbr.rel (%p228) target = $region20
        $region19: #{tpu_custom_call.1} parent=11 // pred_region
          _
        $region20: #{tpu_custom_call.1} parent=11 // pred_fallthru
          _
        // Predicated region
        $region21: #{tpu_custom_call.1} parent=11 // pred_check
          %p231 = pneg %p110
        $region22: #{tpu_custom_call.1} parent=11 // pred_check_branch
          %233 = sbr.rel (%p231) target = $region24
        $region23: #{tpu_custom_call.1} parent=11 // pred_region
          %235 = vsyncadd [#allocation6], 0
          %s236 = sshll.u32 %s3, 4
          %s237 = int_to_ptr.hbm [resolvable:$true] %s236
          %s238 = sshll.u32 [#allocation7], 4
          %s239 = int_to_ptr.vmem [resolvable:$true] %s238
          %244 = dma.hbm_to_vmem [thread:$0]  %s237, 1024, %s239, [#allocation6], 64, 64, 4
        $region24: #{tpu_custom_call.1} parent=11 // pred_fallthru
          _
        // Predicated region
        $region25: #{tpu_custom_call.1} parent=11 // pred_check
          %p245 = pneg %p131
        $region26: #{tpu_custom_call.1} parent=11 // pred_check_branch
          %247 = sbr.rel (%p245) target = $region28
        $region27: #{tpu_custom_call.1} parent=11 // pred_region
          _
        $region28: #{tpu_custom_call.1} parent=11 // pred_fallthru
          _
        // Predicated region
        $region29: #{tpu_custom_call.1} parent=11 // pred_check
          %p248 = pneg %p152
        $region30: #{tpu_custom_call.1} parent=11 // pred_check_branch
          %250 = sbr.rel (%p248) target = $region32
        $region31: #{tpu_custom_call.1} parent=11 // pred_region
          %252 = vsyncadd [#allocation9], 0
          %s253 = sshll.u32 %s5, 4
          %s254 = int_to_ptr.hbm [resolvable:$true] %s253
          %s255 = sshll.u32 [#allocation8], 4
          %s256 = int_to_ptr.vmem [resolvable:$true] %s255
          %261 = dma.hbm_to_vmem [thread:$0]  %s254, 1024, %s256, [#allocation9], 64, 64, 4
        $region32: #{tpu_custom_call.1} parent=11 // pred_fallthru
          _
        // Predicated region
        $region33: #{tpu_custom_call.1} parent=11 // pred_check
          %p262 = pneg %p173
        $region34: #{tpu_custom_call.1} parent=11 // pred_check_branch
          %264 = sbr.rel (%p262) target = $region36
        $region35: #{tpu_custom_call.1} parent=11 // pred_region
          _
        $region36: #{tpu_custom_call.1} parent=11 // pred_fallthru
          _
      $region12: #{tpu_custom_call.1} parent=5 // pred_fallthru
        _
      %p265 = scmp.lt.s32.totalorder %s21, 2
      // Predicated region
      $region37: #{tpu_custom_call.1} parent=5 // pred_check
        %p266 = pneg %p265
      $region38: #{tpu_custom_call.1} parent=5 // pred_check_branch
        %268 = sbr.rel (%p266) target = $region40
      $region39: #{tpu_custom_call.1} parent=5 // pred_region
        // Predicated region
        $region41: #{tpu_custom_call.1} parent=39 // pred_check
          %p269 = pneg %p41
        $region42: #{tpu_custom_call.1} parent=39 // pred_check_branch
          %271 = sbr.rel (%p269) target = $region44
        $region43: #{tpu_custom_call.1} parent=39 // pred_region
          %s272 = sand.u32 %s31, 1
          %s273 = scalar_lea.sflag [#allocation3], %s272
          %s274 = sand.u32 %s31, 1
          %s275 = smul.addr %s274, 16
          %s276 = scalar_lea.vmem [#allocation2], %s275
          %s277 = smul.u32 4, %s21
          %279 = vsyncadd %s273, 0
          %s280 = smul.addr %s277, 4
          %s281 = scalar_lea.hbm %s0, %s280
          %s282 = sshll.u32 %s281, 4
          %s283 = int_to_ptr.hbm [resolvable:$true] %s282
          %s284 = sshll.u32 %s276, 4
          %s285 = int_to_ptr.vmem [resolvable:$true] %s284
          %290 = dma.hbm_to_vmem [thread:$0]  %s283, 256, %s285, %s273, 64, 64, 4
        $region44: #{tpu_custom_call.1} parent=39 // pred_fallthru
          _
      $region40: #{tpu_custom_call.1} parent=5 // pred_fallthru
        _
      %p291 = scmp.le.s32.totalorder 1, %s21
      %p292 = scmp.lt.s32.totalorder %s21, 3
      %p293 = pnand %p291, %p292
      %p294 = pneg %p293
      // Predicated region
      $region45: #{tpu_custom_call.1} parent=5 // pred_check
        _
      $region46: #{tpu_custom_call.1} parent=5 // pred_check_branch
        %296 = sbr.rel (%p293) target = $region48
      $region47: #{tpu_custom_call.1} parent=5 // pred_region
        %s297 = ssub.s32 %s21, 1
        %s298 = sand.u32 %s34, 1
        %s299 = scalar_lea.sflag [#allocation3], %s298
        %s300 = sand.u32 %s34, 1
        %s301 = smul.addr %s300, 16
        %s302 = scalar_lea.vmem [#allocation2], %s301
        // Predicated region
        $region49: #{tpu_custom_call.1} parent=47 // pred_check
          %p303 = pneg %p47
        $region50: #{tpu_custom_call.1} parent=47 // pred_check_branch
          %305 = sbr.rel (%p303) target = $region52
        $region51: #{tpu_custom_call.1} parent=47 // pred_region
          %307 = dma.done %s299, 256
        $region52: #{tpu_custom_call.1} parent=47 // pred_fallthru
          _
        // Predicated region
        $region53: #{tpu_custom_call.1} parent=47 // pred_check
          %p308 = pneg %p68
        $region54: #{tpu_custom_call.1} parent=47 // pred_check_branch
          %310 = sbr.rel (%p308) target = $region56
        $region55: #{tpu_custom_call.1} parent=47 // pred_region
          %312 = dma.done [#allocation6], 1024
        $region56: #{tpu_custom_call.1} parent=47 // pred_fallthru
          _
        // Predicated region
        $region57: #{tpu_custom_call.1} parent=47 // pred_check
          %p313 = pneg %p110
        $region58: #{tpu_custom_call.1} parent=47 // pred_check_branch
          %315 = sbr.rel (%p313) target = $region60
        $region59: #{tpu_custom_call.1} parent=47 // pred_region
          %317 = dma.done [#allocation6], 1024
        $region60: #{tpu_custom_call.1} parent=47 // pred_fallthru
          _
        // Predicated region
        $region61: #{tpu_custom_call.1} parent=47 // pred_check
          %p318 = pneg %p152
        $region62: #{tpu_custom_call.1} parent=47 // pred_check_branch
          %320 = sbr.rel (%p318) target = $region64
        $region63: #{tpu_custom_call.1} parent=47 // pred_region
          %322 = dma.done [#allocation9], 1024
        $region64: #{tpu_custom_call.1} parent=47 // pred_fallthru
          _
        %s323 = sand.u32 %s34, 1
        %s324 = scalar_lea.sflag [#allocation3], %s323
        %s325 = sand.u32 %s34, 1
        %s326 = smul.addr %s325, 16
        %s327 = scalar_lea.vmem [#allocation2], %s326
        %p328 = pneg %p47
        %p329 = pneg %p44
        %p330 = pneg %p68
        %p331 = pneg %p65
        %p332 = pneg %p89
        %p333 = pneg %p86
        %p334 = pneg %p110
        %p335 = pneg %p107
        %p336 = pneg %p131
        %p337 = pneg %p128
        %p338 = pneg %p152
        %p339 = pneg %p149
        %p340 = pneg %p173
        %p341 = pneg %p170
        %p342 = pneg %p199
        %p343 = pneg %p196
        %s344 = sand.u32 %s186, 1
        %s345 = scalar_lea.sflag [#allocation4], %s344
        %s346 = sand.u32 %s186, 1
        %s347 = smul.addr %s346, 96
        %s348 = scalar_lea.vmem [#allocation10], %s347
        %s349 = smul.u32 4, %s26
        %s350 = smul.u32 4, %s26
        %v351 = vld [vmem:[%s302] sm:$0xf]
        %v352 = vld [vmem:[%s302 + $0x4] sm:$0xf]
        %v353 = vld [vmem:[%s302 + $0x8] sm:$0xf]
        %v354 = vld [vmem:[%s302 + $0xc] sm:$0xf]
        %v355 = vld [vmem:[#allocation5] sm:$0xf]
        %v356 = vld [vmem:[#allocation5 + $0x4] sm:$0xf]
        %v357 = vld [vmem:[#allocation5 + $0x8] sm:$0xf]
        %v358 = vld [vmem:[#allocation5 + $0xc] sm:$0xf]
        %v359 = vld [vmem:[#allocation5 + $0x10] sm:$0xf]
        %v360 = vld [vmem:[#allocation5 + $0x14] sm:$0xf]
        %v361 = vld [vmem:[#allocation5 + $0x18] sm:$0xf]
        %v362 = vld [vmem:[#allocation5 + $0x1c] sm:$0xf]
        %v363 = vld [vmem:[#allocation5 + $0x20] sm:$0xf]
        %v364 = vld [vmem:[#allocation5 + $0x24] sm:$0xf]
        %v365 = vld [vmem:[#allocation5 + $0x28] sm:$0xf]
        %v366 = vld [vmem:[#allocation5 + $0x2c] sm:$0xf]
        %v367 = vld [vmem:[#allocation5 + $0x30] sm:$0xf]
        %v368 = vld [vmem:[#allocation5 + $0x34] sm:$0xf]
        %v369 = vld [vmem:[#allocation5 + $0x38] sm:$0xf]
        %v370 = vld [vmem:[#allocation5 + $0x3c] sm:$0xf]
        %v371 = vld [vmem:[%s2] sm:$0x1]
        %v373 = vperm.slane %v371, 0
        %v379 = vunpack.c.l.b16 %v351
        %v380 = vunpack.c.l.b16 %v352
        %v381 = vunpack.c.l.b16 %v353
        %v382 = vunpack.c.l.b16 %v354
        %v383 = vpack.c.b16 %v380, %v379
        %v384 = vpack.c.b16 %v382, %v381
        %v403 = vunpack.c.l.b16 %v355
        %v404 = vunpack.c.l.b16 %v356
        %v405 = vunpack.c.l.b16 %v357
        %v406 = vunpack.c.l.b16 %v358
        %v407 = vunpack.c.l.b16 %v359
        %v408 = vunpack.c.l.b16 %v360
        %v409 = vunpack.c.l.b16 %v361
        %v410 = vunpack.c.l.b16 %v362
        %v411 = vunpack.c.l.b16 %v363
        %v412 = vunpack.c.l.b16 %v364
        %v413 = vunpack.c.l.b16 %v365
        %v414 = vunpack.c.l.b16 %v366
        %v415 = vunpack.c.l.b16 %v367
        %v416 = vunpack.c.l.b16 %v368
        %v417 = vunpack.c.l.b16 %v369
        %v418 = vunpack.c.l.b16 %v370
        %v419 = vpack.c.b16 %v404, %v403
        %v420 = vpack.c.b16 %v406, %v405
        %v421 = vpack.c.b16 %v408, %v407
        %v422 = vpack.c.b16 %v410, %v409
        %v423 = vpack.c.b16 %v412, %v411
        %v424 = vpack.c.b16 %v414, %v413
        %v425 = vpack.c.b16 %v416, %v415
        %v426 = vpack.c.b16 %v418, %v417
        %435 = vmatpush.bf16.msra.mxu0 %v426
        %436 = vmatpush.bf16.msra.mxu0 %v425
        %437 = vmatpush.bf16.msra.mxu0 %v424
        %438 = vmatpush.bf16.msra.mxu0 %v423
        %439 = vmatpush.bf16.msra.mxu0 %v422
        %440 = vmatpush.bf16.msra.mxu0 %v421
        %441 = vmatpush.bf16.msra.mxu0 %v420
        %442 = vmatpush.bf16.msra.mxu0 %v419
        %443 = vmatmul.bf16.gmra.mxu0 %v383
        %v444 = vpop.f32.mrf.mxu0
        %v445 = vadd.f32 %v373, %v444
        %v446 = vpop.f32.mrf.mxu0
        %v447 = vadd.f32 %v373, %v446
        %448 = vmatmul.bf16.gmra.mxu0 %v384
        %v449 = vpop.f32.mrf.mxu0
        %v450 = vadd.f32 %v373, %v449
        %v451 = vpop.f32.mrf.mxu0
        %v452 = vadd.f32 %v373, %v451
        %453 = vdwg.mxu0
        %v454 = vmax.f32 %v445, 0.0
        %v455 = vmax.f32 %v447, 0.0
        %v456 = vmax.f32 %v450, 0.0
        %v457 = vmax.f32 %v452, 0.0
        %v458 = vpack.c.bf16 %v455, %v454
        %v459 = vpack.c.bf16 %v457, %v456
        %v460 = vld [vmem:[#allocation7] sm:$0xf]
        %v461 = vld [vmem:[#allocation7 + $0x4] sm:$0xf]
        %v462 = vld [vmem:[#allocation7 + $0x8] sm:$0xf]
        %v463 = vld [vmem:[#allocation7 + $0xc] sm:$0xf]
        %v464 = vld [vmem:[#allocation7 + $0x10] sm:$0xf]
        %v465 = vld [vmem:[#allocation7 + $0x14] sm:$0xf]
        %v466 = vld [vmem:[#allocation7 + $0x18] sm:$0xf]
        %v467 = vld [vmem:[#allocation7 + $0x1c] sm:$0xf]
        %v468 = vld [vmem:[#allocation7 + $0x20] sm:$0xf]
        %v469 = vld [vmem:[#allocation7 + $0x24] sm:$0xf]
        %v470 = vld [vmem:[#allocation7 + $0x28] sm:$0xf]
        %v471 = vld [vmem:[#allocation7 + $0x2c] sm:$0xf]
        %v472 = vld [vmem:[#allocation7 + $0x30] sm:$0xf]
        %v473 = vld [vmem:[#allocation7 + $0x34] sm:$0xf]
        %v474 = vld [vmem:[#allocation7 + $0x38] sm:$0xf]
        %v475 = vld [vmem:[#allocation7 + $0x3c] sm:$0xf]
        %v476 = vld [vmem:[%s4] sm:$0x1]
        %v478 = vperm.slane %v476, 0
        %v496 = vunpack.c.l.b16 %v460
        %v497 = vunpack.c.l.b16 %v461
        %v498 = vunpack.c.l.b16 %v462
        %v499 = vunpack.c.l.b16 %v463
        %v500 = vunpack.c.l.b16 %v464
        %v501 = vunpack.c.l.b16 %v465
        %v502 = vunpack.c.l.b16 %v466
        %v503 = vunpack.c.l.b16 %v467
        %v504 = vunpack.c.l.b16 %v468
        %v505 = vunpack.c.l.b16 %v469
        %v506 = vunpack.c.l.b16 %v470
        %v507 = vunpack.c.l.b16 %v471
        %v508 = vunpack.c.l.b16 %v472
        %v509 = vunpack.c.l.b16 %v473
        %v510 = vunpack.c.l.b16 %v474
        %v511 = vunpack.c.l.b16 %v475
        %v512 = vpack.c.b16 %v497, %v496
        %v513 = vpack.c.b16 %v499, %v498
        %v514 = vpack.c.b16 %v501, %v500
        %v515 = vpack.c.b16 %v503, %v502
        %v516 = vpack.c.b16 %v505, %v504
        %v517 = vpack.c.b16 %v507, %v506
        %v518 = vpack.c.b16 %v509, %v508
        %v519 = vpack.c.b16 %v511, %v510
        %528 = vmatpush.bf16.msra.mxu0 %v519
        %529 = vmatpush.bf16.msra.mxu0 %v518
        %530 = vmatpush.bf16.msra.mxu0 %v517
        %531 = vmatpush.bf16.msra.mxu0 %v516
        %532 = vmatpush.bf16.msra.mxu0 %v515
        %533 = vmatpush.bf16.msra.mxu0 %v514
        %534 = vmatpush.bf16.msra.mxu0 %v513
        %535 = vmatpush.bf16.msra.mxu0 %v512
        %536 = vmatmul.bf16.gmra.mxu0 %v458
        %v537 = vpop.f32.mrf.mxu0
        %v538 = vadd.f32 %v478, %v537
        %v539 = vpop.f32.mrf.mxu0
        %v540 = vadd.f32 %v478, %v539
        %541 = vmatmul.bf16.gmra.mxu0 %v459
        %v542 = vpop.f32.mrf.mxu0
        %v543 = vadd.f32 %v478, %v542
        %v544 = vpop.f32.mrf.mxu0
        %v545 = vadd.f32 %v478, %v544
        %546 = vdwg.mxu0
        %v547 = vmax.f32 %v538, 0.0
        %v548 = vmax.f32 %v540, 0.0
        %v549 = vmax.f32 %v543, 0.0
        %v550 = vmax.f32 %v545, 0.0
        %v551 = vpack.c.bf16 %v548, %v547
        %v552 = vpack.c.bf16 %v550, %v549
        %v553 = vld [vmem:[#allocation8] sm:$0xf]
        %v554 = vld [vmem:[#allocation8 + $0x4] sm:$0xf]
        %v555 = vld [vmem:[#allocation8 + $0x8] sm:$0xf]
        %v556 = vld [vmem:[#allocation8 + $0xc] sm:$0xf]
        %v557 = vld [vmem:[#allocation8 + $0x10] sm:$0xf]
        %v558 = vld [vmem:[#allocation8 + $0x14] sm:$0xf]
        %v559 = vld [vmem:[#allocation8 + $0x18] sm:$0xf]
        %v560 = vld [vmem:[#allocation8 + $0x1c] sm:$0xf]
        %v561 = vld [vmem:[#allocation8 + $0x20] sm:$0xf]
        %v562 = vld [vmem:[#allocation8 + $0x24] sm:$0xf]
        %v563 = vld [vmem:[#allocation8 + $0x28] sm:$0xf]
        %v564 = vld [vmem:[#allocation8 + $0x2c] sm:$0xf]
        %v565 = vld [vmem:[#allocation8 + $0x30] sm:$0xf]
        %v566 = vld [vmem:[#allocation8 + $0x34] sm:$0xf]
        %v567 = vld [vmem:[#allocation8 + $0x38] sm:$0xf]
        %v568 = vld [vmem:[#allocation8 + $0x3c] sm:$0xf]
        %v569 = vld [vmem:[%s6] sm:$0x1]
        %v571 = vperm.slane %v569, 0
        %v589 = vunpack.c.l.b16 %v553
        %v590 = vunpack.c.l.b16 %v554
        %v591 = vunpack.c.l.b16 %v555
        %v592 = vunpack.c.l.b16 %v556
        %v593 = vunpack.c.l.b16 %v557
        %v594 = vunpack.c.l.b16 %v558
        %v595 = vunpack.c.l.b16 %v559
        %v596 = vunpack.c.l.b16 %v560
        %v597 = vunpack.c.l.b16 %v561
        %v598 = vunpack.c.l.b16 %v562
        %v599 = vunpack.c.l.b16 %v563
        %v600 = vunpack.c.l.b16 %v564
        %v601 = vunpack.c.l.b16 %v565
        %v602 = vunpack.c.l.b16 %v566
        %v603 = vunpack.c.l.b16 %v567
        %v604 = vunpack.c.l.b16 %v568
        %v605 = vpack.c.b16 %v590, %v589
        %v606 = vpack.c.b16 %v592, %v591
        %v607 = vpack.c.b16 %v594, %v593
        %v608 = vpack.c.b16 %v596, %v595
        %v609 = vpack.c.b16 %v598, %v597
        %v610 = vpack.c.b16 %v600, %v599
        %v611 = vpack.c.b16 %v602, %v601
        %v612 = vpack.c.b16 %v604, %v603
        %621 = vmatpush.bf16.msra.mxu0 %v612
        %622 = vmatpush.bf16.msra.mxu0 %v611
        %623 = vmatpush.bf16.msra.mxu0 %v610
        %624 = vmatpush.bf16.msra.mxu0 %v609
        %625 = vmatpush.bf16.msra.mxu0 %v608
        %626 = vmatpush.bf16.msra.mxu0 %v607
        %627 = vmatpush.bf16.msra.mxu0 %v606
        %628 = vmatpush.bf16.msra.mxu0 %v605
        %629 = vmatmul.bf16.gmra.mxu0 %v551
        %v630 = vpop.f32.mrf.mxu0
        %v631 = vadd.f32 %v571, %v630
        %v632 = vpop.f32.mrf.mxu0
        %v633 = vadd.f32 %v571, %v632
        %634 = vmatmul.bf16.gmra.mxu0 %v552
        %v635 = vpop.f32.mrf.mxu0
        %v636 = vadd.f32 %v571, %v635
        %v637 = vpop.f32.mrf.mxu0
        %v638 = vadd.f32 %v571, %v637
        %639 = vdwg.mxu0
        %640 = vmax.xlane.f32.xlu0 %v631
        %v641 = vpop.xlane.xlu0 %640
        %642 = vmax.xlane.f32.xlu0 %v633
        %v643 = vpop.xlane.xlu0 %642
        %644 = vmax.xlane.f32.xlu0 %v636
        %v645 = vpop.xlane.xlu0 %644
        %646 = vmax.xlane.f32.xlu0 %v638
        %v647 = vpop.xlane.xlu0 %646
        %v648 = vsub.f32 %v631, %v641
        %v649 = vsub.f32 %v633, %v643
        %v650 = vsub.f32 %v636, %v645
        %v651 = vsub.f32 %v638, %v647
        %v652 = vmul.f32 %v648, 1.442695
        %v653 = vpow.pop %v652
        %v654 = vmul.f32 %v649, 1.442695
        %v655 = vpow.pop %v654
        %v656 = vmul.f32 %v650, 1.442695
        %v657 = vpow.pop %v656
        %v658 = vmul.f32 %v651, 1.442695
        %v659 = vpow.pop %v658
        %660 = vadd.xlane.f32.xlu0 %v653
        %v661 = vpop.xlane.xlu0 %660
        %662 = vadd.xlane.f32.xlu0 %v655
        %v663 = vpop.xlane.xlu0 %662
        %664 = vadd.xlane.f32.xlu0 %v657
        %v665 = vpop.xlane.xlu0 %664
        %666 = vadd.xlane.f32.xlu0 %v659
        %v667 = vpop.xlane.xlu0 %666
        %v668 = vlog2.pop %v661
        %v669 = vmul.f32 %v668, 0.6931472
        %v670 = vlog2.pop %v663
        %v671 = vmul.f32 %v670, 0.6931472
        %v672 = vlog2.pop %v665
        %v673 = vmul.f32 %v672, 0.6931472
        %v674 = vlog2.pop %v667
        %v675 = vmul.f32 %v674, 0.6931472
        %v676 = vadd.f32 %v641, %v669
        %v677 = vadd.f32 %v643, %v671
        %v678 = vadd.f32 %v645, %v673
        %v679 = vadd.f32 %v647, %v675
        %v680 = vsub.f32 %v631, %v676
        %v681 = vsub.f32 %v633, %v677
        %v682 = vsub.f32 %v636, %v678
        %v683 = vsub.f32 %v638, %v679
        %v684 = vmul.f32 %v680, 1.442695
        %v685 = vpow.pop %v684
        %v686 = vmul.f32 %v681, 1.442695
        %v687 = vpow.pop %v686
        %v688 = vmul.f32 %v682, 1.442695
        %v689 = vpow.pop %v688
        %v690 = vmul.f32 %v683, 1.442695
        %v691 = vpow.pop %v690
        %692 = vst [vmem:[%s348] sm:$0xff] %v631
        %693 = vst [vmem:[%s348 + $0x8] sm:$0xff] %v633
        %694 = vst [vmem:[%s348 + $0x10] sm:$0xff] %v636
        %695 = vst [vmem:[%s348 + $0x18] sm:$0xff] %v638
        %s696 = scalar_lea.vmem %s348, 32 [#allocation10]
        %697 = vst [vmem:[%s696] sm:$0xff] %v680
        %698 = vst [vmem:[%s696 + $0x8] sm:$0xff] %v681
        %699 = vst [vmem:[%s696 + $0x10] sm:$0xff] %v682
        %700 = vst [vmem:[%s696 + $0x18] sm:$0xff] %v683
        %s701 = scalar_lea.vmem %s348, 64 [#allocation10]
        %702 = vst [vmem:[%s701] sm:$0xff] %v685
        %703 = vst [vmem:[%s701 + $0x8] sm:$0xff] %v687
        %704 = vst [vmem:[%s701 + $0x10] sm:$0xff] %v689
        %705 = vst [vmem:[%s701 + $0x18] sm:$0xff] %v691
        %s706 = sand.u32 %s186, 1
        %s707 = scalar_lea.sflag [#allocation4], %s706
        %s708 = sand.u32 %s186, 1
        %s709 = smul.addr %s708, 96
        %s710 = scalar_lea.vmem [#allocation10], %s709
        // Predicated region
        $region65: #{tpu_custom_call.1} parent=47 // pred_check
          %p711 = pneg %p196
        $region66: #{tpu_custom_call.1} parent=47 // pred_check_branch
          %713 = sbr.rel (%p711) target = $region68
        $region67: #{tpu_custom_call.1} parent=47 // pred_region
          #allocation12 [shape = 'u32[6]{0}', space=smem, size = 0x18, scoped, tag = 'DMA stride descriptor']
          %s714 = smul.u32 4, %s26
          %716 = vsyncadd %s707, 0
          %s717 = smul.addr %s714, 8
          %s718 = scalar_lea.hbm %s7, %s717
          %s720 = sshll.u32 1, 14
          %s721 = sxor.u32 4294967295, %s720
          %s724 = sshll.u32 7, 18
          %s725 = sxor.u32 4294967295, %s724
          %s726 = sand.u32 0, %s725
          %s728 = sor.u32 %s726, 0
          %s729 = sshll.u32 %s710, 4
          %s730 = int_to_ptr.vmem [resolvable:$true] %s729
          %s731 = sshll.u32 %s718, 4
          %s732 = int_to_ptr.hbm [resolvable:$true] %s731
          %738 = sst [smem:[#allocation12]] 512
          %s739 = scalar_lea.smem [#allocation12], 1
          %740 = sst [smem:[%s739]] 1024
          %s741 = scalar_lea.smem [#allocation12], 2
          %742 = sst [smem:[%s741]] 4
          %s743 = scalar_lea.smem [#allocation12], 3
          %744 = sst [smem:[%s743]] 128
          %s745 = scalar_lea.smem [#allocation12], 4
          %746 = sst [smem:[%s745]] 128
          %s747 = scalar_lea.smem [#allocation12], 5
          %748 = sst [smem:[%s747]] 8
          %750 = dma.general %s730, 1536, %s732, %s707, [#allocation11], [#allocation12], %s728, 0
        $region68: #{tpu_custom_call.1} parent=47 // pred_fallthru
          _
      $region48: #{tpu_custom_call.1} parent=5 // pred_fallthru
        _
      %p751 = scmp.le.s32.totalorder 2, %s21
      // Predicated region
      $region69: #{tpu_custom_call.1} parent=5 // pred_check
        %p752 = pneg %p751
      $region70: #{tpu_custom_call.1} parent=5 // pred_check_branch
        %754 = sbr.rel (%p752) target = $region72
      $region71: #{tpu_custom_call.1} parent=5 // pred_region
        %s755 = ssub.s32 %s21, 2
        // Predicated region
        $region73: #{tpu_custom_call.1} parent=71 // pred_check
          %p756 = pneg %p202
        $region74: #{tpu_custom_call.1} parent=71 // pred_check_branch
          %758 = sbr.rel (%p756) target = $region76
        $region75: #{tpu_custom_call.1} parent=71 // pred_region
          %s759 = sand.u32 %s187, 1
          %s760 = scalar_lea.sflag [#allocation4], %s759
          %s761 = sand.u32 %s187, 1
          %s762 = smul.addr %s761, 96
          %s763 = scalar_lea.vmem [#allocation10], %s762
          %765 = dma.done %s760, 1536
        $region76: #{tpu_custom_call.1} parent=71 // pred_fallthru
          _
      $region72: #{tpu_custom_call.1} parent=5 // pred_fallthru
        _
    $region6: #{tpu_custom_call.1} parent=1 // loop_footer
      %s25 = sadd.s32 1, %s21
    $region7: #{tpu_custom_call.1} parent=1 // loop_footer_branch
      %20 = sbr.rel target = $region3
    $region8: #{tpu_custom_call.1} parent=1 // loop_exit
      _
    %766 = vsyncpa [#allocation3], 1
    %s767 = scalar_lea.sflag [#allocation3], 1
    %768 = vsyncpa %s767, 1
    %769 = vsyncpa [#allocation6], 1
    %770 = vsyncpa [#allocation9], 1
    %771 = vsyncpa [#allocation4], 1
    %s772 = scalar_lea.sflag [#allocation4], 1
    %773 = vsyncpa %s772, 1

// kernel: tpu_custom_call.1
$region0: #{tpu_custom_call.1}
  #allocation0 [shape = 'u32[]', space=smem, size = 0x4, offset = 0x4, fixed_abs, tag = 'smem constant byte address 0x4 - core index']
  #allocation1 [shape = 'u32[72,128]{1,0:T(1,128)}', space=vmem, size = 0x9000, scoped, tag = 'internal scratch']
  #allocation11 [shape = 's32[]', space=sflag, size = 0x4, offset = 0, fixed_abs, tag = 'sflag constant byte address 0x0 - dummy sync flag']
  %s0 = inlined_call_operand.hbm [shape: bf16[64,128], index: 0, kind: input, shape index: {}]
  %s1 = inlined_call_operand.hbm [shape: bf16[128,128], index: 1, kind: input, shape index: {}]
  %s2 = inlined_call_operand.vmem [shape: f32[1,128], index: 2, kind: input, shape index: {}]
  %s3 = inlined_call_operand.hbm [shape: bf16[128,128], index: 3, kind: input, shape index: {}]
  %s4 = inlined_call_operand.vmem [shape: f32[1,128], index: 4, kind: input, shape index: {}]
  %s5 = inlined_call_operand.hbm [shape: bf16[128,128], index: 5, kind: input, shape index: {}]
  %s6 = inlined_call_operand.vmem [shape: f32[1,128], index: 6, kind: input, shape index: {}]
  %s7 = inlined_call_operand.hbm [shape: f32[3,64,128], index: 7, kind: output, shape index: {}]
  %s8 = sld [smem:[#allocation0]]
  $region77: #{tpu_custom_call.1} parent=0
    _
  %s10 = ssub.s32 1, %s8
  %s11 = scalar_select 0, %s10, %s8
  $region1: #{tpu_custom_call.1} parent=0
    #allocation2 [shape = 'u8[16384]{0}', space=vmem, size = 0x4000, scoped, tag = 'input window, operand 0']
    #allocation3 [shape = 's32[2]{0}', space=sflag, size = 0x8, scoped, tag = 'scoped memory for tpu_custom_call.1']
    #allocation4 [shape = 's32[2]{0}', space=sflag, size = 0x8, scoped, tag = 'scoped memory for tpu_custom_call.1']
    #allocation5 [shape = 'u8[32768]{0}', space=vmem, size = 0x8000, scoped, tag = 'input window, operand 1, single buffered']
    #allocation6 [shape = 's32[1]{0}', space=sflag, size = 0x4, scoped, tag = 'scoped memory for tpu_custom_call.1']
    #allocation7 [shape = 'u8[32768]{0}', space=vmem, size = 0x8000, scoped, tag = 'input window, operand 3, single buffered']
    #allocation8 [shape = 'u8[32768]{0}', space=vmem, size = 0x8000, scoped, tag = 'input window, operand 5, single buffered']
    #allocation9 [shape = 's32[1]{0}', space=sflag, size = 0x4, scoped, tag = 'scoped memory for tpu_custom_call.1']
    #allocation10 [shape = 'u8[98304]{0}', space=vmem, size = 0x18000, scoped, tag = 'output window, operand 0']
    %12 = vsyncpa [#allocation3], 0
    %s13 = scalar_lea.sflag [#allocation3], 1
    %14 = vsyncpa %s13, 0
    %15 = vsyncpa [#allocation6], 0
    %16 = vsyncpa [#allocation9], 0
    %17 = vsyncpa [#allocation4], 0
    %s18 = scalar_lea.sflag [#allocation4], 1
    %19 = vsyncpa %s18, 0
    loop: start=0, step=1, limit=4
    $region2: #{tpu_custom_call.1} parent=1 // loop_pre_header
      _
    $region3: #{tpu_custom_call.1} parent=1 // loop_header
      %s21 = sphi 0, %s25
      %p22 = scmp.ge.s32.totalorder %s21, 4
      %s31 = sphi 0, %s33
      %s34 = sphi 0, %s31
      %s35 = sphi 0, %s34
      %s51 = sphi 0, %s35
      %s55 = sphi 0, %s55
      %s57 = sphi 0, %s55
      %s58 = sphi 0, %s57
      %s72 = sphi 0, %s58
      %s76 = sphi 0, %s76
      %s78 = sphi 0, %s76
      %s79 = sphi 0, %s78
      %s93 = sphi 0, %s79
      %s97 = sphi 0, %s97
      %s99 = sphi 0, %s97
      %s100 = sphi 0, %s99
      %s114 = sphi 0, %s100
      %s118 = sphi 0, %s118
      %s120 = sphi 0, %s118
      %s121 = sphi 0, %s120
      %s135 = sphi 0, %s121
      %s139 = sphi 0, %s139
      %s141 = sphi 0, %s139
      %s142 = sphi 0, %s141
      %s156 = sphi 0, %s142
      %s160 = sphi 0, %s160
      %s162 = sphi 0, %s160
      %s163 = sphi 0, %s162
      %s177 = sphi 0, %s163
      %s183 = sphi 0, %s185
      %s186 = sphi 0, %s183
      %s187 = sphi 0, %s186
      %s203 = sphi 0, %s187
    $region4: #{tpu_custom_call.1} parent=1 // loop_header_branch
      %24 = sbr.rel (%p22) target = $region8
    $region5: #{tpu_custom_call.1} parent=1 // loop_body
      %s26 = ssub.s32 %s21, 1
      %s27 = ssub.s32 %s21, 2
      %s28 = sadd.s32 %s21, 1
      %s29 = ssub.s32 %s21, %s28
      %p30 = scmp.eq.s32.totalorder %s29, 0
      %s32 = sadd.s32 %s31, 1
      %s33 = scalar_select %p30, %s31, %s32
      %p36 = pneg %p30
      %p37 = scmp.eq.s32.totalorder %s21, 1
      %p38 = por %p36, %p37
      %p39 = scmp.ne.s32.totalorder %s31, %s34
      %p40 = scmp.eq.s32.totalorder %s21, 0
      %p41 = por %p39, %p40
      %p42 = scmp.ne.s32.totalorder %s31, %s34
      %p43 = scmp.eq.s32.totalorder %s26, 1
      %p44 = por %p42, %p43
      %p45 = scmp.ne.s32.totalorder %s34, %s35
      %p46 = scmp.eq.s32.totalorder %s26, 0
      %p47 = por %p45, %p46
      %p48 = scmp.ne.s32.totalorder %s34, %s35
      %p49 = scmp.eq.s32.totalorder %s27, 1
      %p50 = por %p48, %p49
      %p52 = scmp.ne.s32.totalorder %s35, %s51
      %p53 = scmp.eq.s32.totalorder %s27, 0
      %p54 = por %p52, %p53
      %s56 = sadd.s32 %s55, 1
      %p59 = scmp.eq.s32.totalorder %s21, 1
      %p60 = scmp.ne.s32.totalorder %s55, %s57
      %p61 = scmp.eq.s32.totalorder %s21, 0
      %p62 = por %p60, %p61
      %p63 = scmp.ne.s32.totalorder %s55, %s57
      %p64 = scmp.eq.s32.totalorder %s26, 1
      %p65 = por %p63, %p64
      %p66 = scmp.ne.s32.totalorder %s57, %s58
      %p67 = scmp.eq.s32.totalorder %s26, 0
      %p68 = por %p66, %p67
      %p69 = scmp.ne.s32.totalorder %s57, %s58
      %p70 = scmp.eq.s32.totalorder %s27, 1
      %p71 = por %p69, %p70
      %p73 = scmp.ne.s32.totalorder %s58, %s72
      %p74 = scmp.eq.s32.totalorder %s27, 0
      %p75 = por %p73, %p74
      %s77 = sadd.s32 %s76, 1
      %p80 = scmp.eq.s32.totalorder %s21, 1
      %p81 = scmp.ne.s32.totalorder %s76, %s78
      %p82 = scmp.eq.s32.totalorder %s21, 0
      %p83 = por %p81, %p82
      %p84 = scmp.ne.s32.totalorder %s76, %s78
      %p85 = scmp.eq.s32.totalorder %s26, 1
      %p86 = por %p84, %p85
      %p87 = scmp.ne.s32.totalorder %s78, %s79
      %p88 = scmp.eq.s32.totalorder %s26, 0
      %p89 = por %p87, %p88
      %p90 = scmp.ne.s32.totalorder %s78, %s79
      %p91 = scmp.eq.s32.totalorder %s27, 1
      %p92 = por %p90, %p91
      %p94 = scmp.ne.s32.totalorder %s79, %s93
      %p95 = scmp.eq.s32.totalorder %s27, 0
      %p96 = por %p94, %p95
      %s98 = sadd.s32 %s97, 1
      %p101 = scmp.eq.s32.totalorder %s21, 1
      %p102 = scmp.ne.s32.totalorder %s97, %s99
      %p103 = scmp.eq.s32.totalorder %s21, 0
      %p104 = por %p102, %p103
      %p105 = scmp.ne.s32.totalorder %s97, %s99
      %p106 = scmp.eq.s32.totalorder %s26, 1
      %p107 = por %p105, %p106
      %p108 = scmp.ne.s32.totalorder %s99, %s100
      %p109 = scmp.eq.s32.totalorder %s26, 0
      %p110 = por %p108, %p109
      %p111 = scmp.ne.s32.totalorder %s99, %s100
      %p112 = scmp.eq.s32.totalorder %s27, 1
      %p113 = por %p111, %p112
      %p115 = scmp.ne.s32.totalorder %s100, %s114
      %p116 = scmp.eq.s32.totalorder %s27, 0
      %p117 = por %p115, %p116
      %s119 = sadd.s32 %s118, 1
      %p122 = scmp.eq.s32.totalorder %s21, 1
      %p123 = scmp.ne.s32.totalorder %s118, %s120
      %p124 = scmp.eq.s32.totalorder %s21, 0
      %p125 = por %p123, %p124
      %p126 = scmp.ne.s32.totalorder %s118, %s120
      %p127 = scmp.eq.s32.totalorder %s26, 1
      %p128 = por %p126, %p127
      %p129 = scmp.ne.s32.totalorder %s120, %s121
      %p130 = scmp.eq.s32.totalorder %s26, 0
      %p131 = por %p129, %p130
      %p132 = scmp.ne.s32.totalorder %s120, %s121
      %p133 = scmp.eq.s32.totalorder %s27, 1
      %p134 = por %p132, %p133
      %p136 = scmp.ne.s32.totalorder %s121, %s135
      %p137 = scmp.eq.s32.totalorder %s27, 0
      %p138 = por %p136, %p137
      %s140 = sadd.s32 %s139, 1
      %p143 = scmp.eq.s32.totalorder %s21, 1
      %p144 = scmp.ne.s32.totalorder %s139, %s141
      %p145 = scmp.eq.s32.totalorder %s21, 0
      %p146 = por %p144, %p145
      %p147 = scmp.ne.s32.totalorder %s139, %s141
      %p148 = scmp.eq.s32.totalorder %s26, 1
      %p149 = por %p147, %p148
      %p150 = scmp.ne.s32.totalorder %s141, %s142
      %p151 = scmp.eq.s32.totalorder %s26, 0
      %p152 = por %p150, %p151
      %p153 = scmp.ne.s32.totalorder %s141, %s142
      %p154 = scmp.eq.s32.totalorder %s27, 1
      %p155 = por %p153, %p154
      %p157 = scmp.ne.s32.totalorder %s142, %s156
      %p158 = scmp.eq.s32.totalorder %s27, 0
      %p159 = por %p157, %p158
      %s161 = sadd.s32 %s160, 1
      %p164 = scmp.eq.s32.totalorder %s21, 1
      %p165 = scmp.ne.s32.totalorder %s160, %s162
      %p166 = scmp.eq.s32.totalorder %s21, 0
      %p167 = por %p165, %p166
      %p168 = scmp.ne.s32.totalorder %s160, %s162
      %p169 = scmp.eq.s32.totalorder %s26, 1
      %p170 = por %p168, %p169
      %p171 = scmp.ne.s32.totalorder %s162, %s163
      %p172 = scmp.eq.s32.totalorder %s26, 0
      %p173 = por %p171, %p172
      %p174 = scmp.ne.s32.totalorder %s162, %s163
      %p175 = scmp.eq.s32.totalorder %s27, 1
      %p176 = por %p174, %p175
      %p178 = scmp.ne.s32.totalorder %s163, %s177
      %p179 = scmp.eq.s32.totalorder %s27, 0
      %p180 = por %p178, %p179
      %s181 = ssub.s32 %s21, %s28
      %p182 = scmp.eq.s32.totalorder %s181, 0
      %s184 = sadd.s32 %s183, 1
      %s185 = scalar_select %p182, %s183, %s184
      %p188 = pneg %p182
      %p189 = scmp.eq.s32.totalorder %s21, 1
      %p190 = por %p188, %p189
      %p191 = scmp.ne.s32.totalorder %s183, %s186
      %p192 = scmp.eq.s32.totalorder %s21, 0
      %p193 = por %p191, %p192
      %p194 = scmp.ne.s32.totalorder %s183, %s186
      %p195 = scmp.eq.s32.totalorder %s26, 1
      %p196 = por %p194, %p195
      %p197 = scmp.ne.s32.totalorder %s186, %s187
      %p198 = scmp.eq.s32.totalorder %s26, 0
      %p199 = por %p197, %p198
      %p200 = scmp.ne.s32.totalorder %s186, %s187
      %p201 = scmp.eq.s32.totalorder %s27, 1
      %p202 = por %p200, %p201
      %p204 = scmp.ne.s32.totalorder %s187, %s203
      %p205 = scmp.eq.s32.totalorder %s27, 0
      %p206 = por %p204, %p205
      %p207 = scmp.le.s32.totalorder 1, %s21
      %p208 = scmp.lt.s32.totalorder %s21, 3
      %p209 = pnand %p207, %p208
      %p210 = pneg %p209
      // Predicated region
      $region9: #{tpu_custom_call.1} parent=5 // pred_check
        _
      $region10: #{tpu_custom_call.1} parent=5 // pred_check_branch
        %212 = sbr.rel (%p209) target = $region12
      $region11: #{tpu_custom_call.1} parent=5 // pred_region
        %s213 = ssub.s32 %s21, 1
        // Predicated region
        $region13: #{tpu_custom_call.1} parent=11 // pred_check
          %p214 = pneg %p68
        $region14: #{tpu_custom_call.1} parent=11 // pred_check_branch
          %216 = sbr.rel (%p214) target = $region16
        $region15: #{tpu_custom_call.1} parent=11 // pred_region
          %218 = vsyncadd [#allocation6], 0
          %s219 = sshll.u32 %s1, 4
          %s220 = int_to_ptr.hbm [resolvable:$true] %s219
          %s221 = sshll.u32 [#allocation5], 4
          %s222 = int_to_ptr.vmem [resolvable:$true] %s221
          %227 = dma.hbm_to_vmem [thread:$0]  %s220, 1024, %s222, [#allocation6], 64, 64, 4
        $region16: #{tpu_custom_call.1} parent=11 // pred_fallthru
          _
        // Predicated region
        $region17: #{tpu_custom_call.1} parent=11 // pred_check
          %p228 = pneg %p89
        $region18: #{tpu_custom_call.1} parent=11 // pred_check_branch
          %230 = sbr.rel (%p228) target = $region20
        $region19: #{tpu_custom_call.1} parent=11 // pred_region
          _
        $region20: #{tpu_custom_call.1} parent=11 // pred_fallthru
          _
        // Predicated region
        $region21: #{tpu_custom_call.1} parent=11 // pred_check
          %p231 = pneg %p110
        $region22: #{tpu_custom_call.1} parent=11 // pred_check_branch
          %233 = sbr.rel (%p231) target = $region24
        $region23: #{tpu_custom_call.1} parent=11 // pred_region
          %235 = vsyncadd [#allocation6], 0
          %s236 = sshll.u32 %s3, 4
          %s237 = int_to_ptr.hbm [resolvable:$true] %s236
          %s238 = sshll.u32 [#allocation7], 4
          %s239 = int_to_ptr.vmem [resolvable:$true] %s238
          %244 = dma.hbm_to_vmem [thread:$0]  %s237, 1024, %s239, [#allocation6], 64, 64, 4
        $region24: #{tpu_custom_call.1} parent=11 // pred_fallthru
          _
        // Predicated region
        $region25: #{tpu_custom_call.1} parent=11 // pred_check
          %p245 = pneg %p131
        $region26: #{tpu_custom_call.1} parent=11 // pred_check_branch
          %247 = sbr.rel (%p245) target = $region28
        $region27: #{tpu_custom_call.1} parent=11 // pred_region
          _
        $region28: #{tpu_custom_call.1} parent=11 // pred_fallthru
          _
        // Predicated region
        $region29: #{tpu_custom_call.1} parent=11 // pred_check
          %p248 = pneg %p152
        $region30: #{tpu_custom_call.1} parent=11 // pred_check_branch
          %250 = sbr.rel (%p248) target = $region32
        $region31: #{tpu_custom_call.1} parent=11 // pred_region
          %252 = vsyncadd [#allocation9], 0
          %s253 = sshll.u32 %s5, 4
          %s254 = int_to_ptr.hbm [resolvable:$true] %s253
          %s255 = sshll.u32 [#allocation8], 4
          %s256 = int_to_ptr.vmem [resolvable:$true] %s255
          %261 = dma.hbm_to_vmem [thread:$0]  %s254, 1024, %s256, [#allocation9], 64, 64, 4
        $region32: #{tpu_custom_call.1} parent=11 // pred_fallthru
          _
        // Predicated region
        $region33: #{tpu_custom_call.1} parent=11 // pred_check
          %p262 = pneg %p173
        $region34: #{tpu_custom_call.1} parent=11 // pred_check_branch
          %264 = sbr.rel (%p262) target = $region36
        $region35: #{tpu_custom_call.1} parent=11 // pred_region
          _
        $region36: #{tpu_custom_call.1} parent=11 // pred_fallthru
          _
      $region12: #{tpu_custom_call.1} parent=5 // pred_fallthru
        _
      %p265 = scmp.lt.s32.totalorder %s21, 2
      // Predicated region
      $region37: #{tpu_custom_call.1} parent=5 // pred_check
        %p266 = pneg %p265
      $region38: #{tpu_custom_call.1} parent=5 // pred_check_branch
        %268 = sbr.rel (%p266) target = $region40
      $region39: #{tpu_custom_call.1} parent=5 // pred_region
        // Predicated region
        $region41: #{tpu_custom_call.1} parent=39 // pred_check
          %p269 = pneg %p41
        $region42: #{tpu_custom_call.1} parent=39 // pred_check_branch
          %271 = sbr.rel (%p269) target = $region44
        $region43: #{tpu_custom_call.1} parent=39 // pred_region
          %s272 = sand.u32 %s31, 1
          %s273 = scalar_lea.sflag [#allocation3], %s272
          %s274 = sand.u32 %s31, 1
          %s275 = smul.addr %s274, 16
          %s276 = scalar_lea.vmem [#allocation2], %s275
          %s277 = smul.u32 4, %s21
          %279 = vsyncadd %s273, 0
          %s280 = smul.addr %s277, 4
          %s281 = scalar_lea.hbm %s0, %s280
          %s282 = sshll.u32 %s281, 4
          %s283 = int_to_ptr.hbm [resolvable:$true] %s282
          %s284 = sshll.u32 %s276, 4
          %s285 = int_to_ptr.vmem [resolvable:$true] %s284
          %290 = dma.hbm_to_vmem [thread:$0]  %s283, 256, %s285, %s273, 64, 64, 4
        $region44: #{tpu_custom_call.1} parent=39 // pred_fallthru
          _
      $region40: #{tpu_custom_call.1} parent=5 // pred_fallthru
        _
      %p291 = scmp.le.s32.totalorder 1, %s21
      %p292 = scmp.lt.s32.totalorder %s21, 3
      %p293 = pnand %p291, %p292
      %p294 = pneg %p293
      // Predicated region
      $region45: #{tpu_custom_call.1} parent=5 // pred_check
        _
      $region46: #{tpu_custom_call.1} parent=5 // pred_check_branch
        %296 = sbr.rel (%p293) target = $region48
      $region47: #{tpu_custom_call.1} parent=5 // pred_region
        %s297 = ssub.s32 %s21, 1
        %s298 = sand.u32 %s34, 1
        %s299 = scalar_lea.sflag [#allocation3], %s298
        %s300 = sand.u32 %s34, 1
        %s301 = smul.addr %s300, 16
        %s302 = scalar_lea.vmem [#allocation2], %s301
        // Predicated region
        $region49: #{tpu_custom_call.1} parent=47 // pred_check
          %p303 = pneg %p47
        $region50: #{tpu_custom_call.1} parent=47 // pred_check_branch
          %305 = sbr.rel (%p303) target = $region52
        $region51: #{tpu_custom_call.1} parent=47 // pred_region
          %307 = dma.done %s299, 256
        $region52: #{tpu_custom_call.1} parent=47 // pred_fallthru
          _
        // Predicated region
        $region53: #{tpu_custom_call.1} parent=47 // pred_check
          %p308 = pneg %p68
        $region54: #{tpu_custom_call.1} parent=47 // pred_check_branch
          %310 = sbr.rel (%p308) target = $region56
        $region55: #{tpu_custom_call.1} parent=47 // pred_region
          %312 = dma.done [#allocation6], 1024
        $region56: #{tpu_custom_call.1} parent=47 // pred_fallthru
          _
        // Predicated region
        $region57: #{tpu_custom_call.1} parent=47 // pred_check
          %p313 = pneg %p110
        $region58: #{tpu_custom_call.1} parent=47 // pred_check_branch
          %315 = sbr.rel (%p313) target = $region60
        $region59: #{tpu_custom_call.1} parent=47 // pred_region
          %317 = dma.done [#allocation6], 1024
        $region60: #{tpu_custom_call.1} parent=47 // pred_fallthru
          _
        // Predicated region
        $region61: #{tpu_custom_call.1} parent=47 // pred_check
          %p318 = pneg %p152
        $region62: #{tpu_custom_call.1} parent=47 // pred_check_branch
          %320 = sbr.rel (%p318) target = $region64
        $region63: #{tpu_custom_call.1} parent=47 // pred_region
          %322 = dma.done [#allocation9], 1024
        $region64: #{tpu_custom_call.1} parent=47 // pred_fallthru
          _
        %s323 = sand.u32 %s34, 1
        %s324 = scalar_lea.sflag [#allocation3], %s323
        %s325 = sand.u32 %s34, 1
        %s326 = smul.addr %s325, 16
        %s327 = scalar_lea.vmem [#allocation2], %s326
        %p328 = pneg %p47
        %p329 = pneg %p44
        %p330 = pneg %p68
        %p331 = pneg %p65
        %p332 = pneg %p89
        %p333 = pneg %p86
        %p334 = pneg %p110
        %p335 = pneg %p107
        %p336 = pneg %p131
        %p337 = pneg %p128
        %p338 = pneg %p152
        %p339 = pneg %p149
        %p340 = pneg %p173
        %p341 = pneg %p170
        %p342 = pneg %p199
        %p343 = pneg %p196
        %s344 = sand.u32 %s186, 1
        %s345 = scalar_lea.sflag [#allocation4], %s344
        %s346 = sand.u32 %s186, 1
        %s347 = smul.addr %s346, 96
        %s348 = scalar_lea.vmem [#allocation10], %s347
        %s349 = smul.u32 4, %s26
        %s350 = smul.u32 4, %s26
        %v351 = vld [vmem:[%s302] sm:$0xf]
        %v352 = vld [vmem:[%s302 + $0x4] sm:$0xf]
        %v353 = vld [vmem:[%s302 + $0x8] sm:$0xf]
        %v354 = vld [vmem:[%s302 + $0xc] sm:$0xf]
        %v355 = vld [vmem:[#allocation5] sm:$0xf]
        %v356 = vld [vmem:[#allocation5 + $0x4] sm:$0xf]
        %v357 = vld [vmem:[#allocation5 + $0x8] sm:$0xf]
        %v358 = vld [vmem:[#allocation5 + $0xc] sm:$0xf]
        %v359 = vld [vmem:[#allocation5 + $0x10] sm:$0xf]
        %v360 = vld [vmem:[#allocation5 + $0x14] sm:$0xf]
        %v361 = vld [vmem:[#allocation5 + $0x18] sm:$0xf]
        %v362 = vld [vmem:[#allocation5 + $0x1c] sm:$0xf]
        %v363 = vld [vmem:[#allocation5 + $0x20] sm:$0xf]
        %v364 = vld [vmem:[#allocation5 + $0x24] sm:$0xf]
        %v365 = vld [vmem:[#allocation5 + $0x28] sm:$0xf]
        %v366 = vld [vmem:[#allocation5 + $0x2c] sm:$0xf]
        %v367 = vld [vmem:[#allocation5 + $0x30] sm:$0xf]
        %v368 = vld [vmem:[#allocation5 + $0x34] sm:$0xf]
        %v369 = vld [vmem:[#allocation5 + $0x38] sm:$0xf]
        %v370 = vld [vmem:[#allocation5 + $0x3c] sm:$0xf]
        %v371 = vld [vmem:[%s2] sm:$0x1]
        %v373 = vperm.slane %v371, 0
        %v379 = vunpack.c.l.b16 %v351
        %v380 = vunpack.c.l.b16 %v352
        %v381 = vunpack.c.l.b16 %v353
        %v382 = vunpack.c.l.b16 %v354
        %v383 = vpack.c.b16 %v380, %v379
        %v384 = vpack.c.b16 %v382, %v381
        %v403 = vunpack.c.l.b16 %v355
        %v404 = vunpack.c.l.b16 %v356
        %v405 = vunpack.c.l.b16 %v357
        %v406 = vunpack.c.l.b16 %v358
        %v407 = vunpack.c.l.b16 %v359
        %v408 = vunpack.c.l.b16 %v360
        %v409 = vunpack.c.l.b16 %v361
        %v410 = vunpack.c.l.b16 %v362
        %v411 = vunpack.c.l.b16 %v363
        %v412 = vunpack.c.l.b16 %v364
        %v413 = vunpack.c.l.b16 %v365
        %v414 = vunpack.c.l.b16 %v366
        %v415 = vunpack.c.l.b16 %v367
        %v416 = vunpack.c.l.b16 %v368
        %v417 = vunpack.c.l.b16 %v369
        %v418 = vunpack.c.l.b16 %v370
        %v419 = vpack.c.b16 %v404, %v403
        %v420 = vpack.c.b16 %v406, %v405
        %v421 = vpack.c.b16 %v408, %v407
        %v422 = vpack.c.b16 %v410, %v409
        %v423 = vpack.c.b16 %v412, %v411
        %v424 = vpack.c.b16 %v414, %v413
        %v425 = vpack.c.b16 %v416, %v415
        %v426 = vpack.c.b16 %v418, %v417
        %435 = vmatpush.bf16.msra.mxu0 %v426
        %436 = vmatpush.bf16.msra.mxu0 %v425
        %437 = vmatpush.bf16.msra.mxu0 %v424
        %438 = vmatpush.bf16.msra.mxu0 %v423
        %439 = vmatpush.bf16.msra.mxu0 %v422
        %440 = vmatpush.bf16.msra.mxu0 %v421
        %441 = vmatpush.bf16.msra.mxu0 %v420
        %442 = vmatpush.bf16.msra.mxu0 %v419
        %443 = vmatmul.bf16.gmra.mxu0 %v383
        %v444 = vpop.f32.mrf.mxu0
        %v445 = vadd.f32 %v373, %v444
        %v446 = vpop.f32.mrf.mxu0
        %v447 = vadd.f32 %v373, %v446
        %448 = vmatmul.bf16.gmra.mxu0 %v384
        %v449 = vpop.f32.mrf.mxu0
        %v450 = vadd.f32 %v373, %v449
        %v451 = vpop.f32.mrf.mxu0
        %v452 = vadd.f32 %v373, %v451
        %453 = vdwg.mxu0
        %v454 = vmax.f32 %v445, 0.0
        %v455 = vmax.f32 %v447, 0.0
        %v456 = vmax.f32 %v450, 0.0
        %v457 = vmax.f32 %v452, 0.0
        %v458 = vpack.c.bf16 %v455, %v454
        %v459 = vpack.c.bf16 %v457, %v456
        %v460 = vld [vmem:[#allocation7] sm:$0xf]
        %v461 = vld [vmem:[#allocation7 + $0x4] sm:$0xf]
        %v462 = vld [vmem:[#allocation7 + $0x8] sm:$0xf]
        %v463 = vld [vmem:[#allocation7 + $0xc] sm:$0xf]
        %v464 = vld [vmem:[#allocation7 + $0x10] sm:$0xf]
        %v465 = vld [vmem:[#allocation7 + $0x14] sm:$0xf]
        %v466 = vld [vmem:[#allocation7 + $0x18] sm:$0xf]
        %v467 = vld [vmem:[#allocation7 + $0x1c] sm:$0xf]
        %v468 = vld [vmem:[#allocation7 + $0x20] sm:$0xf]
        %v469 = vld [vmem:[#allocation7 + $0x24] sm:$0xf]
        %v470 = vld [vmem:[#allocation7 + $0x28] sm:$0xf]
        %v471 = vld [vmem:[#allocation7 + $0x2c] sm:$0xf]
        %v472 = vld [vmem:[#allocation7 + $0x30] sm:$0xf]
        %v473 = vld [vmem:[#allocation7 + $0x34] sm:$0xf]
        %v474 = vld [vmem:[#allocation7 + $0x38] sm:$0xf]
        %v475 = vld [vmem:[#allocation7 + $0x3c] sm:$0xf]
        %v476 = vld [vmem:[%s4] sm:$0x1]
        %v478 = vperm.slane %v476, 0
        %v496 = vunpack.c.l.b16 %v460
        %v497 = vunpack.c.l.b16 %v461
        %v498 = vunpack.c.l.b16 %v462
        %v499 = vunpack.c.l.b16 %v463
        %v500 = vunpack.c.l.b16 %v464
        %v501 = vunpack.c.l.b16 %v465
        %v502 = vunpack.c.l.b16 %v466
        %v503 = vunpack.c.l.b16 %v467
        %v504 = vunpack.c.l.b16 %v468
        %v505 = vunpack.c.l.b16 %v469
        %v506 = vunpack.c.l.b16 %v470
        %v507 = vunpack.c.l.b16 %v471
        %v508 = vunpack.c.l.b16 %v472
        %v509 = vunpack.c.l.b16 %v473
        %v510 = vunpack.c.l.b16 %v474
        %v511 = vunpack.c.l.b16 %v475
        %v512 = vpack.c.b16 %v497, %v496
        %v513 = vpack.c.b16 %v499, %v498
        %v514 = vpack.c.b16 %v501, %v500
        %v515 = vpack.c.b16 %v503, %v502
        %v516 = vpack.c.b16 %v505, %v504
        %v517 = vpack.c.b16 %v507, %v506
        %v518 = vpack.c.b16 %v509, %v508
        %v519 = vpack.c.b16 %v511, %v510
        %528 = vmatpush.bf16.msra.mxu0 %v519
        %529 = vmatpush.bf16.msra.mxu0 %v518
        %530 = vmatpush.bf16.msra.mxu0 %v517
        %531 = vmatpush.bf16.msra.mxu0 %v516
        %532 = vmatpush.bf16.msra.mxu0 %v515
        %533 = vmatpush.bf16.msra.mxu0 %v514
        %534 = vmatpush.bf16.msra.mxu0 %v513
        %535 = vmatpush.bf16.msra.mxu0 %v512
        %536 = vmatmul.bf16.gmra.mxu0 %v458
        %v537 = vpop.f32.mrf.mxu0
        %v538 = vadd.f32 %v478, %v537
        %v539 = vpop.f32.mrf.mxu0
        %v540 = vadd.f32 %v478, %v539
        %541 = vmatmul.bf16.gmra.mxu0 %v459
        %v542 = vpop.f32.mrf.mxu0
        %v543 = vadd.f32 %v478, %v542
        %v544 = vpop.f32.mrf.mxu0
        %v545 = vadd.f32 %v478, %v544
        %546 = vdwg.mxu0
        %v547 = vmax.f32 %v538, 0.0
        %v548 = vmax.f32 %v540, 0.0
        %v549 = vmax.f32 %v543, 0.0
        %v550 = vmax.f32 %v545, 0.0
        %v551 = vpack.c.bf16 %v548, %v547
        %v552 = vpack.c.bf16 %v550, %v549
        %v553 = vld [vmem:[#allocation8] sm:$0xf]
        %v554 = vld [vmem:[#allocation8 + $0x4] sm:$0xf]
        %v555 = vld [vmem:[#allocation8 + $0x8] sm:$0xf]
        %v556 = vld [vmem:[#allocation8 + $0xc] sm:$0xf]
        %v557 = vld [vmem:[#allocation8 + $0x10] sm:$0xf]
        %v558 = vld [vmem:[#allocation8 + $0x14] sm:$0xf]
        %v559 = vld [vmem:[#allocation8 + $0x18] sm:$0xf]
        %v560 = vld [vmem:[#allocation8 + $0x1c] sm:$0xf]
        %v561 = vld [vmem:[#allocation8 + $0x20] sm:$0xf]
        %v562 = vld [vmem:[#allocation8 + $0x24] sm:$0xf]
        %v563 = vld [vmem:[#allocation8 + $0x28] sm:$0xf]
        %v564 = vld [vmem:[#allocation8 + $0x2c] sm:$0xf]
        %v565 = vld [vmem:[#allocation8 + $0x30] sm:$0xf]
        %v566 = vld [vmem:[#allocation8 + $0x34] sm:$0xf]
        %v567 = vld [vmem:[#allocation8 + $0x38] sm:$0xf]
        %v568 = vld [vmem:[#allocation8 + $0x3c] sm:$0xf]
        %v569 = vld [vmem:[%s6] sm:$0x1]
        %v571 = vperm.slane %v569, 0
        %v589 = vunpack.c.l.b16 %v553
        %v590 = vunpack.c.l.b16 %v554
        %v591 = vunpack.c.l.b16 %v555
        %v592 = vunpack.c.l.b16 %v556
        %v593 = vunpack.c.l.b16 %v557
        %v594 = vunpack.c.l.b16 %v558
        %v595 = vunpack.c.l.b16 %v559
        %v596 = vunpack.c.l.b16 %v560
        %v597 = vunpack.c.l.b16 %v561
        %v598 = vunpack.c.l.b16 %v562
        %v599 = vunpack.c.l.b16 %v563
        %v600 = vunpack.c.l.b16 %v564
        %v601 = vunpack.c.l.b16 %v565
        %v602 = vunpack.c.l.b16 %v566
        %v603 = vunpack.c.l.b16 %v567
        %v604 = vunpack.c.l.b16 %v568
        %v605 = vpack.c.b16 %v590, %v589
        %v606 = vpack.c.b16 %v592, %v591
        %v607 = vpack.c.b16 %v594, %v593
        %v608 = vpack.c.b16 %v596, %v595
        %v609 = vpack.c.b16 %v598, %v597
        %v610 = vpack.c.b16 %v600, %v599
        %v611 = vpack.c.b16 %v602, %v601
        %v612 = vpack.c.b16 %v604, %v603
        %621 = vmatpush.bf16.msra.mxu0 %v612
        %622 = vmatpush.bf16.msra.mxu0 %v611
        %623 = vmatpush.bf16.msra.mxu0 %v610
        %624 = vmatpush.bf16.msra.mxu0 %v609
        %625 = vmatpush.bf16.msra.mxu0 %v608
        %626 = vmatpush.bf16.msra.mxu0 %v607
        %627 = vmatpush.bf16.msra.mxu0 %v606
        %628 = vmatpush.bf16.msra.mxu0 %v605
        %629 = vmatmul.bf16.gmra.mxu0 %v551
        %v630 = vpop.f32.mrf.mxu0
        %v631 = vadd.f32 %v571, %v630
        %v632 = vpop.f32.mrf.mxu0
        %v633 = vadd.f32 %v571, %v632
        %634 = vmatmul.bf16.gmra.mxu0 %v552
        %v635 = vpop.f32.mrf.mxu0
        %v636 = vadd.f32 %v571, %v635
        %v637 = vpop.f32.mrf.mxu0
        %v638 = vadd.f32 %v571, %v637
        %639 = vdwg.mxu0
        %640 = vmax.xlane.f32.xlu0 %v631
        %v641 = vpop.xlane.xlu0 %640
        %642 = vmax.xlane.f32.xlu0 %v633
        %v643 = vpop.xlane.xlu0 %642
        %644 = vmax.xlane.f32.xlu0 %v636
        %v645 = vpop.xlane.xlu0 %644
        %646 = vmax.xlane.f32.xlu0 %v638
        %v647 = vpop.xlane.xlu0 %646
        %v648 = vsub.f32 %v631, %v641
        %v649 = vsub.f32 %v633, %v643
        %v650 = vsub.f32 %v636, %v645
        %v651 = vsub.f32 %v638, %v647
        %v652 = vmul.f32 %v648, 1.442695
        %v653 = vpow.pop %v652
        %v654 = vmul.f32 %v649, 1.442695
        %v655 = vpow.pop %v654
        %v656 = vmul.f32 %v650, 1.442695
        %v657 = vpow.pop %v656
        %v658 = vmul.f32 %v651, 1.442695
        %v659 = vpow.pop %v658
        %660 = vadd.xlane.f32.xlu0 %v653
        %v661 = vpop.xlane.xlu0 %660
        %662 = vadd.xlane.f32.xlu0 %v655
        %v663 = vpop.xlane.xlu0 %662
        %664 = vadd.xlane.f32.xlu0 %v657
        %v665 = vpop.xlane.xlu0 %664
        %666 = vadd.xlane.f32.xlu0 %v659
        %v667 = vpop.xlane.xlu0 %666
        %v668 = vlog2.pop %v661
        %v669 = vmul.f32 %v668, 0.6931472
        %v670 = vlog2.pop %v663
        %v671 = vmul.f32 %v670, 0.6931472
        %v672 = vlog2.pop %v665
        %v673 = vmul.f32 %v672, 0.6931472
        %v674 = vlog2.pop %v667
        %v675 = vmul.f32 %v674, 0.6931472
        %v676 = vadd.f32 %v641, %v669
        %v677 = vadd.f32 %v643, %v671
        %v678 = vadd.f32 %v645, %v673
        %v679 = vadd.f32 %v647, %v675
        %v680 = vsub.f32 %v631, %v676
        %v681 = vsub.f32 %v633, %v677
        %v682 = vsub.f32 %v636, %v678
        %v683 = vsub.f32 %v638, %v679
        %v684 = vmul.f32 %v680, 1.442695
        %v685 = vpow.pop %v684
        %v686 = vmul.f32 %v681, 1.442695
        %v687 = vpow.pop %v686
        %v688 = vmul.f32 %v682, 1.442695
        %v689 = vpow.pop %v688
        %v690 = vmul.f32 %v683, 1.442695
        %v691 = vpow.pop %v690
        %692 = vst [vmem:[%s348] sm:$0xff] %v631
        %693 = vst [vmem:[%s348 + $0x8] sm:$0xff] %v633
        %694 = vst [vmem:[%s348 + $0x10] sm:$0xff] %v636
        %695 = vst [vmem:[%s348 + $0x18] sm:$0xff] %v638
        %s696 = scalar_lea.vmem %s348, 32 [#allocation10]
        %697 = vst [vmem:[%s696] sm:$0xff] %v680
        %698 = vst [vmem:[%s696 + $0x8] sm:$0xff] %v681
        %699 = vst [vmem:[%s696 + $0x10] sm:$0xff] %v682
        %700 = vst [vmem:[%s696 + $0x18] sm:$0xff] %v683
        %s701 = scalar_lea.vmem %s348, 64 [#allocation10]
        %702 = vst [vmem:[%s701] sm:$0xff] %v685
        %703 = vst [vmem:[%s701 + $0x8] sm:$0xff] %v687
        %704 = vst [vmem:[%s701 + $0x10] sm:$0xff] %v689
        %705 = vst [vmem:[%s701 + $0x18] sm:$0xff] %v691
        %s706 = sand.u32 %s186, 1
        %s707 = scalar_lea.sflag [#allocation4], %s706
        %s708 = sand.u32 %s186, 1
        %s709 = smul.addr %s708, 96
        %s710 = scalar_lea.vmem [#allocation10], %s709
        // Predicated region
        $region65: #{tpu_custom_call.1} parent=47 // pred_check
          %p711 = pneg %p196
        $region66: #{tpu_custom_call.1} parent=47 // pred_check_branch
          %713 = sbr.rel (%p711) target = $region68
        $region67: #{tpu_custom_call.1} parent=47 // pred_region
          #allocation12 [shape = 'u32[6]{0}', space=smem, size = 0x18, scoped, tag = 'DMA stride descriptor']
          %s714 = smul.u32 4, %s26
          %716 = vsyncadd %s707, 0
          %s717 = smul.addr %s714, 8
          %s718 = scalar_lea.hbm %s7, %s717
          %s720 = sshll.u32 1, 14
          %s721 = sxor.u32 4294967295, %s720
          %s724 = sshll.u32 7, 18
          %s725 = sxor.u32 4294967295, %s724
          %s726 = sand.u32 0, %s725
          %s728 = sor.u32 %s726, 0
          %s729 = sshll.u32 %s710, 4
          %s730 = int_to_ptr.vmem [resolvable:$true] %s729
          %s731 = sshll.u32 %s718, 4
          %s732 = int_to_ptr.hbm [resolvable:$true] %s731
          %738 = sst [smem:[#allocation12]] 512
          %s739 = scalar_lea.smem [#allocation12], 1
          %740 = sst [smem:[%s739]] 1024
          %s741 = scalar_lea.smem [#allocation12], 2
          %742 = sst [smem:[%s741]] 4
          %s743 = scalar_lea.smem [#allocation12], 3
          %744 = sst [smem:[%s743]] 128
          %s745 = scalar_lea.smem [#allocation12], 4
          %746 = sst [smem:[%s745]] 128
          %s747 = scalar_lea.smem [#allocation12], 5
          %748 = sst [smem:[%s747]] 8
          %750 = dma.general %s730, 1536, %s732, %s707, [#allocation11], [#allocation12], %s728, 0
        $region68: #{tpu_custom_call.1} parent=47 // pred_fallthru
          _
      $region48: #{tpu_custom_call.1} parent=5 // pred_fallthru
        _
      %p751 = scmp.le.s32.totalorder 2, %s21
      // Predicated region
      $region69: #{tpu_custom_call.1} parent=5 // pred_check
        %p752 = pneg %p751
      $region70: #{tpu_custom_call.1} parent=5 // pred_check_branch
        %754 = sbr.rel (%p752) target = $region72
      $region71: #{tpu_custom_call.1} parent=5 // pred_region
        %s755 = ssub.s32 %s21, 2
        // Predicated region
        $region73: #{tpu_custom_call.1} parent=71 // pred_check
          %p756 = pneg %p202
        $region74: #{tpu_custom_call.1} parent=71 // pred_check_branch
          %758 = sbr.rel (%p756) target = $region76
        $region75: #{tpu_custom_call.1} parent=71 // pred_region
          %s759 = sand.u32 %s187, 1
          %s760 = scalar_lea.sflag [#allocation4], %s759
          %s761 = sand.u32 %s187, 1
          %s762 = smul.addr %s761, 96
          %s763 = scalar_lea.vmem [#allocation10], %s762
          %765 = dma.done %s760, 1536
        $region76: #{tpu_custom_call.1} parent=71 // pred_fallthru
          _
      $region72: #{tpu_custom_call.1} parent=5 // pred_fallthru
        _
    $region6: #{tpu_custom_call.1} parent=1 // loop_footer
      %s25 = sadd.s32 1, %s21
    $region7: #{tpu_custom_call.1} parent=1 // loop_footer_branch
      %20 = sbr.rel target = $region3
    $region8: #{tpu_custom_call.1} parent=1 // loop_exit
      _
    %766 = vsyncpa [#allocation3], 1
    %s767 = scalar_lea.sflag [#allocation3], 1
    %768 = vsyncpa %s767, 1
    %769 = vsyncpa [#allocation6], 1
    %770 = vsyncpa [#allocation9], 1
    %771 = vsyncpa [#allocation4], 1
    %s772 = scalar_lea.sflag [#allocation4], 1
    %773 = vsyncpa %s772, 1

</llo_original>
